<compile_context>
chip_gen: v6e
topology: v6e:2x2x1
jax: 0.10.0
libtpu: 0.0.40
codegen_flags: <defaults>
</compile_context>

<pallas_src>
import jax
import jax.numpy as jnp
from jax import lax
from jax.experimental import pallas as pl
from jax.experimental.pallas import tpu as pltpu

_WEIGHTS = (2.0, 1.0, 1.0, 1.0, 1.0)   # loss = 2*loss1 + loss2 + loss3 + loss4 + loss5
_N_OUT = 5
_ACC_ROWS = 16                          # 5 inter + 5 psum + 5 bce + 1 ysum (8-aligned)


def _make_kernel(tr, sub):
    """Kernel over one (tr, 128) pixel tile of all 6 streams."""
    assert tr % sub == 0
    n_sub = tr // sub

    def _acc_row(o_ref, row, v):
        # v: (1, 128) f32 — full-lane read-modify-write of one accumulator row.
        o_ref[pl.ds(row, 1), :] += v

    def _chunk(o_ref, xs, y):
        # xs: 5x (sub,128) f32 logits; y: (sub,128) f32 target in {0,1}.
        _acc_row(o_ref, 15, jnp.sum(y, axis=0, keepdims=True))
        for k in range(_N_OUT):
            x = xs[k]
            e = jnp.exp(-jnp.abs(x))                        # reused: sigmoid + BCE
            inv1pe = pl.reciprocal(1.0 + e, approx=True)    # EUP, not a VALU divide
            p = jnp.where(x >= 0, inv1pe, e * inv1pe)       # stable sigmoid(x)
            bce = jnp.maximum(x, 0.0) - x * y + jnp.log1p(e)
            _acc_row(o_ref, k, jnp.sum(p * y, axis=0, keepdims=True))
            _acc_row(o_ref, 5 + k, jnp.sum(p, axis=0, keepdims=True))
            _acc_row(o_ref, 10 + k, jnp.sum(bce, axis=0, keepdims=True))

    def kernel(x1_ref, x2_ref, x3_ref, x4_ref, x5_ref, y_ref, o_ref):
        t = pl.program_id(2)

        @pl.when(t == 0)
        def _init():
            o_ref[...] = jnp.zeros_like(o_ref)

        x_refs = (x1_ref, x2_ref, x3_ref, x4_ref, x5_ref)

        if n_sub == 1:
            _chunk(o_ref,
                   tuple(r[...].astype(jnp.float32) for r in x_refs),
                   y_ref[...].astype(jnp.float32))
        else:
            def body(s, carry):
                start = pl.multiple_of(s * sub, sub)
                xs = tuple(r[pl.ds(start, sub), :].astype(jnp.float32)
                           for r in x_refs)
                y = y_ref[pl.ds(start, sub), :].astype(jnp.float32)
                _chunk(o_ref, xs, y)
                return carry
            lax.fori_loop(0, n_sub, body, 0, unroll=True)

    return kernel


def _pick_row_tile(rows, max_rows=1024):
    """Largest tile dividing `rows` that satisfies the (8,128) layout rule."""
    if rows <= max_rows:
        return rows                                  # whole pixel axis, one block
    for tr in range(max_rows - max_rows % 8, 7, -8):
        if rows % tr == 0:
            return tr
    # No multiple-of-8 divisor <= max_rows: full-image block, but keep it
    # inside a sane VMEM budget (6 streams x 2 buffers x rows x 512 B <= ~25 MiB).
    # TODO(synk): pad + mask the pixel tail for pathological H*W values.
    if rows <= 4096:
        return rows
    raise NotImplementedError("H*W/128 has no layout-legal tile <= max_rows")


def _pick_sub_chunk(tr, max_sub=256):
    """Compute sub-chunk: bounds live ranges while keeping the DMA tile large."""
    if tr <= max_sub:
        return tr
    for s in range(max_sub - max_sub % 8, 7, -8):
        if tr % s == 0:
            return s
    return tr


def eeemodel_loss(inputs, targets, *, max_rows=1024, max_sub=256):
    """inputs: 5 logits maps, each (B, 1, H, W); targets: (B, H, W) in {0, 1}."""
    B, C, H, W = inputs[0].shape
    assert C == 1
    n_pix = C * H * W
    # TODO(synk): pad + mask the pixel tail when H*W is not a multiple of 128.
    assert n_pix % 128 == 0, "H*W must be a multiple of 128"
    rows = n_pix // 128
    tr = _pick_row_tile(rows, max_rows)
    sub = _pick_sub_chunk(tr, max_sub)
    n_tiles = rows // tr
    # 2-way split of the pixel-tile axis -> second "parallel" grid dim so a
    # v7x megacore has work for both TensorCores even when B is 1 or odd.
    n_split = 2 if (n_tiles % 2 == 0 and n_tiles >= 2) else 1
    tiles_per_split = n_tiles // n_split

    # Pure reshapes only — no stack, no dtype cast (bf16 logits stay bf16).
    xs = [o.reshape(B, rows, 128) for o in inputs]
    y = targets.reshape(B, rows, 128)

    def in_map(b, c, t, _n=tiles_per_split):
        return (b, c * _n + t, 0)

    in_specs = [pl.BlockSpec((pl.Squeezed(), tr, 128), in_map) for _ in range(6)]

    partials = pl.pallas_call(
        _make_kernel(tr, sub),
        out_shape=jax.ShapeDtypeStruct((B, n_split, _ACC_ROWS, 128), jnp.float32),
        grid_spec=pltpu.PrefetchScalarGridSpec(
            num_scalar_prefetch=0,
            grid=(B, n_split, tiles_per_split),          # reduction axis last
            in_specs=in_specs,
            out_specs=pl.BlockSpec(
                (pl.Squeezed(), pl.Squeezed(), _ACC_ROWS, 128),
                lambda b, c, t: (b, c, 0, 0)),
        ),
        compiler_params=pltpu.CompilerParams(
            dimension_semantics=("parallel", "parallel", "arbitrary"),
            vmem_limit_bytes=32 * 1024 * 1024),
    )(*xs, y)

    # Tiny scalar epilogue in JAX: collapse splits/lanes, IOU + BCE means, weights.
    acc = jnp.sum(partials, axis=(1, 3))                 # (B, 16)
    inter = acc[:, 0:5]                                  # sum(sigmoid(x) * y)
    psum = acc[:, 5:10]                                  # sum(sigmoid(x))
    bce = acc[:, 10:15]                                  # sum(BCE elements)
    ysum = acc[:, 15:16]                                 # sum(y)
    union = psum + ysum - inter
    loss_iou = jnp.mean(1.0 - inter / union, axis=0)     # (5,)  mean over B
    loss_bce = jnp.sum(bce, axis=0) / (B * n_pix)        # (5,)  mean over B*H*W
    w = jnp.asarray(_WEIGHTS, dtype=jnp.float32)
    return jnp.dot(w, loss_iou + loss_bce)


def _reference_loss(inputs, targets):
    """Pure-JAX reference replicating the PyTorch forward."""
    gt = targets[:, None, :, :].astype(jnp.float32)      # unsqueeze(dim=1)

    def iou(pred, target):
        inter = jnp.sum(target * pred, axis=(1, 2, 3))
        union = jnp.sum(target, axis=(1, 2, 3)) + jnp.sum(pred, axis=(1, 2, 3)) - inter
        return jnp.mean(1.0 - inter / union)

    def bce_logits(x, y):
        return jnp.mean(jnp.maximum(x, 0.0) - x * y + jnp.log1p(jnp.exp(-jnp.abs(x))))

    losses = [iou(jax.nn.sigmoid(o.astype(jnp.float32)), gt)
              + bce_logits(o.astype(jnp.float32), gt) for o in inputs]
    return 2.0 * losses[0] + losses[1] + losses[2] + losses[3] + losses[4]


if __name__ == "__main__":
    key = jax.random.PRNGKey(0)

    # Config 1: default tiling (single tile per image), B = 2.
    B, H, W = 2, 16, 16
    keys = jax.random.split(key, 6)
    outs = tuple(jax.random.normal(keys[k], (B, 1, H, W), dtype=jnp.float32)
                 for k in range(5))
    targets = (jax.random.uniform(keys[5], (B, H, W)) > 0.5).astype(jnp.float32)

    loss = jax.block_until_ready(eeemodel_loss(outs, targets))
    ref = _reference_loss(outs, targets)
    # approx reciprocal in the sigmoid path -> looser tolerance than exact f32.
    assert jnp.allclose(loss, ref, rtol=5e-3, atol=5e-3), (loss, ref)

    # Config 2: forced multi-tile / 2-way split / sub-chunk loop, odd B = 1.
    B2, H2, W2 = 1, 64, 128
    keys2 = jax.random.split(jax.random.PRNGKey(1), 6)
    outs2 = tuple(jax.random.normal(keys2[k], (B2, 1, H2, W2), dtype=jnp.float32)
                  for k in range(5))
    targets2 = (jax.random.uniform(keys2[5], (B2, H2, W2)) > 0.5).astype(jnp.float32)

    loss2 = jax.block_until_ready(
        eeemodel_loss(outs2, targets2, max_rows=16, max_sub=8))
    ref2 = _reference_loss(outs2, targets2)
    assert jnp.allclose(loss2, ref2, rtol=5e-3, atol=5e-3), (loss2, ref2)

    print("KERNEL_OK")
</pallas_src>

<mosaic_0001>
module attributes {stable_mosaic.version = 11 : i64} {
  func.func @kernel(%arg0: i32, %arg1: i32, %arg2: i32, %arg3: memref<1x2x128xf32, #tpu.memory_space<vmem>>, %arg4: memref<1x2x128xf32, #tpu.memory_space<vmem>>, %arg5: memref<1x2x128xf32, #tpu.memory_space<vmem>>, %arg6: memref<1x2x128xf32, #tpu.memory_space<vmem>>, %arg7: memref<1x2x128xf32, #tpu.memory_space<vmem>>, %arg8: memref<1x2x128xf32, #tpu.memory_space<vmem>>, %arg9: memref<1x1x16x128xf32, #tpu.memory_space<vmem>>) attributes {dimension_semantics = [#tpu.dimension_semantics<parallel>, #tpu.dimension_semantics<parallel>, #tpu.dimension_semantics<arbitrary>], iteration_bounds = array<i64: 2, 1, 1>, scalar_prefetch = 0 : i64, scratch_operands = 0 : i64, tpu.core_type = #tpu.core_type<tc>, window_params = [{transform_indices = @transform_0, window_bounds = array<i64: 1, 2, 128>}, {transform_indices = @transform_1, window_bounds = array<i64: 1, 2, 128>}, {transform_indices = @transform_2, window_bounds = array<i64: 1, 2, 128>}, {transform_indices = @transform_3, window_bounds = array<i64: 1, 2, 128>}, {transform_indices = @transform_4, window_bounds = array<i64: 1, 2, 128>}, {transform_indices = @transform_5, window_bounds = array<i64: 1, 2, 128>}, {transform_indices = @transform_6, window_bounds = array<i64: 1, 1, 16, 128>}]} {
    %c0_i32 = arith.constant 0 : i32
    %0 = arith.cmpi eq, %arg2, %c0_i32 : i32
    %1 = arith.extui %0 : i1 to i32
    %c0_i32_0 = arith.constant 0 : i32
    %2 = arith.cmpi ne, %1, %c0_i32_0 : i32
    scf.if %2 {
      %cst_166 = arith.constant 0.000000e+00 : f32
      %233 = vector.broadcast %cst_166 : f32 to vector<16x128xf32>
      %c0_167 = arith.constant 0 : index
      %c0_168 = arith.constant 0 : index
      %c0_169 = arith.constant 0 : index
      %c0_170 = arith.constant 0 : index
      %234 = vector.load %arg9[%c0_167, %c0_168, %c0_169, %c0_170] : memref<1x1x16x128xf32, #tpu.memory_space<vmem>>, vector<1x1x16x128xf32>
      %235 = vector.shape_cast %234 : vector<1x1x16x128xf32> to vector<16x128xf32>
      %236 = vector.shape_cast %233 : vector<16x128xf32> to vector<1x1x16x128xf32>
      tpu.vector_store %arg9[%c0_167, %c0_168, %c0_169, %c0_170], %236 {strides = array<i32>} : memref<1x1x16x128xf32, #tpu.memory_space<vmem>>, vector<1x1x16x128xf32>,
    } else {
    }
    %c0 = arith.constant 0 : index
    %c0_1 = arith.constant 0 : index
    %c0_2 = arith.constant 0 : index
    %3 = vector.load %arg3[%c0, %c0_1, %c0_2] : memref<1x2x128xf32, #tpu.memory_space<vmem>>, vector<1x2x128xf32>
    %4 = vector.shape_cast %3 : vector<1x2x128xf32> to vector<2x128xf32>
    %c0_3 = arith.constant 0 : index
    %c0_4 = arith.constant 0 : index
    %c0_5 = arith.constant 0 : index
    %5 = vector.load %arg4[%c0_3, %c0_4, %c0_5] : memref<1x2x128xf32, #tpu.memory_space<vmem>>, vector<1x2x128xf32>
    %6 = vector.shape_cast %5 : vector<1x2x128xf32> to vector<2x128xf32>
    %c0_6 = arith.constant 0 : index
    %c0_7 = arith.constant 0 : index
    %c0_8 = arith.constant 0 : index
    %7 = vector.load %arg5[%c0_6, %c0_7, %c0_8] : memref<1x2x128xf32, #tpu.memory_space<vmem>>, vector<1x2x128xf32>
    %8 = vector.shape_cast %7 : vector<1x2x128xf32> to vector<2x128xf32>
    %c0_9 = arith.constant 0 : index
    %c0_10 = arith.constant 0 : index
    %c0_11 = arith.constant 0 : index
    %9 = vector.load %arg6[%c0_9, %c0_10, %c0_11] : memref<1x2x128xf32, #tpu.memory_space<vmem>>, vector<1x2x128xf32>
    %10 = vector.shape_cast %9 : vector<1x2x128xf32> to vector<2x128xf32>
    %c0_12 = arith.constant 0 : index
    %c0_13 = arith.constant 0 : index
    %c0_14 = arith.constant 0 : index
    %11 = vector.load %arg7[%c0_12, %c0_13, %c0_14] : memref<1x2x128xf32, #tpu.memory_space<vmem>>, vector<1x2x128xf32>
    %12 = vector.shape_cast %11 : vector<1x2x128xf32> to vector<2x128xf32>
    %c0_15 = arith.constant 0 : index
    %c0_16 = arith.constant 0 : index
    %c0_17 = arith.constant 0 : index
    %13 = vector.load %arg8[%c0_15, %c0_16, %c0_17] : memref<1x2x128xf32, #tpu.memory_space<vmem>>, vector<1x2x128xf32>
    %14 = vector.shape_cast %13 : vector<1x2x128xf32> to vector<2x128xf32>
    %cst = arith.constant dense<0.000000e+00> : vector<128xf32>
    %15 = vector.multi_reduction <add>, %14, %cst [0] : vector<2x128xf32> to vector<128xf32>
    %16 = vector.shape_cast %15 : vector<128xf32> to vector<1x128xf32>
    %c0_18 = arith.constant 0 : index
    %c0_19 = arith.constant 0 : index
    %c15 = arith.constant 15 : index
    %c0_20 = arith.constant 0 : index
    %17 = vector.load %arg9[%c0_18, %c0_19, %c15, %c0_20] : memref<1x1x16x128xf32, #tpu.memory_space<vmem>>, vector<1x1x1x128xf32>
    %18 = vector.shape_cast %17 : vector<1x1x1x128xf32> to vector<1x128xf32>
    %19 = arith.addf %18, %16 : vector<1x128xf32>
    %c0_21 = arith.constant 0 : index
    %c0_22 = arith.constant 0 : index
    %c15_23 = arith.constant 15 : index
    %c0_24 = arith.constant 0 : index
    %20 = vector.load %arg9[%c0_21, %c0_22, %c15_23, %c0_24] : memref<1x1x16x128xf32, #tpu.memory_space<vmem>>, vector<1x1x1x128xf32>
    %21 = vector.shape_cast %20 : vector<1x1x1x128xf32> to vector<1x128xf32>
    %22 = vector.shape_cast %19 : vector<1x128xf32> to vector<1x1x1x128xf32>
    tpu.vector_store %arg9[%c0_21, %c0_22, %c15_23, %c0_24], %22 {strides = array<i32>} : memref<1x1x16x128xf32, #tpu.memory_space<vmem>>, vector<1x1x1x128xf32>,
    %23 = math.absf %4 : vector<2x128xf32>
    %cst_25 = arith.constant 0.000000e+00 : f32
    %24 = vector.broadcast %cst_25 : f32 to vector<2x128xf32>
    %25 = arith.subf %24, %23 : vector<2x128xf32>
    %26 = math.exp %25 : vector<2x128xf32>
    %cst_26 = arith.constant 1.000000e+00 : f32
    %27 = vector.broadcast %cst_26 : f32 to vector<2x128xf32>
    %28 = arith.addf %27, %26 : vector<2x128xf32>
    %29 = tpu.reciprocal %28 {approx = true} : vector<2x128xf32> -> vector<2x128xf32>
    %cst_27 = arith.constant 0.000000e+00 : f32
    %30 = vector.broadcast %cst_27 : f32 to vector<2x128xf32>
    %31 = arith.cmpf oge, %4, %30 : vector<2x128xf32>
    %32 = arith.mulf %26, %29 : vector<2x128xf32>
    %33 = arith.select %31, %29, %32 : vector<2x128xi1>, vector<2x128xf32>
    %cst_28 = arith.constant 0.000000e+00 : f32
    %34 = vector.broadcast %cst_28 : f32 to vector<2x128xf32>
    %35 = arith.maximumf %4, %34 : vector<2x128xf32>
    %36 = arith.mulf %4, %14 : vector<2x128xf32>
    %37 = arith.subf %35, %36 : vector<2x128xf32>
    %38 = math.log1p %26 : vector<2x128xf32>
    %39 = arith.addf %37, %38 : vector<2x128xf32>
    %40 = arith.mulf %33, %14 : vector<2x128xf32>
    %cst_29 = arith.constant dense<0.000000e+00> : vector<128xf32>
    %41 = vector.multi_reduction <add>, %40, %cst_29 [0] : vector<2x128xf32> to vector<128xf32>
    %42 = vector.shape_cast %41 : vector<128xf32> to vector<1x128xf32>
    %c0_30 = arith.constant 0 : index
    %c0_31 = arith.constant 0 : index
    %c0_32 = arith.constant 0 : index
    %c0_33 = arith.constant 0 : index
    %43 = vector.load %arg9[%c0_30, %c0_31, %c0_32, %c0_33] : memref<1x1x16x128xf32, #tpu.memory_space<vmem>>, vector<1x1x1x128xf32>
    %44 = vector.shape_cast %43 : vector<1x1x1x128xf32> to vector<1x128xf32>
    %45 = arith.addf %44, %42 : vector<1x128xf32>
    %c0_34 = arith.constant 0 : index
    %c0_35 = arith.constant 0 : index
    %c0_36 = arith.constant 0 : index
    %c0_37 = arith.constant 0 : index
    %46 = vector.load %arg9[%c0_34, %c0_35, %c0_36, %c0_37] : memref<1x1x16x128xf32, #tpu.memory_space<vmem>>, vector<1x1x1x128xf32>
    %47 = vector.shape_cast %46 : vector<1x1x1x128xf32> to vector<1x128xf32>
    %48 = vector.shape_cast %45 : vector<1x128xf32> to vector<1x1x1x128xf32>
    tpu.vector_store %arg9[%c0_34, %c0_35, %c0_36, %c0_37], %48 {strides = array<i32>} : memref<1x1x16x128xf32, #tpu.memory_space<vmem>>, vector<1x1x1x128xf32>,
    %cst_38 = arith.constant dense<0.000000e+00> : vector<128xf32>
    %49 = vector.multi_reduction <add>, %33, %cst_38 [0] : vector<2x128xf32> to vector<128xf32>
    %50 = vector.shape_cast %49 : vector<128xf32> to vector<1x128xf32>
    %c0_39 = arith.constant 0 : index
    %c0_40 = arith.constant 0 : index
    %c5 = arith.constant 5 : index
    %c0_41 = arith.constant 0 : index
    %51 = vector.load %arg9[%c0_39, %c0_40, %c5, %c0_41] : memref<1x1x16x128xf32, #tpu.memory_space<vmem>>, vector<1x1x1x128xf32>
    %52 = vector.shape_cast %51 : vector<1x1x1x128xf32> to vector<1x128xf32>
    %53 = arith.addf %52, %50 : vector<1x128xf32>
    %c0_42 = arith.constant 0 : index
    %c0_43 = arith.constant 0 : index
    %c5_44 = arith.constant 5 : index
    %c0_45 = arith.constant 0 : index
    %54 = vector.load %arg9[%c0_42, %c0_43, %c5_44, %c0_45] : memref<1x1x16x128xf32, #tpu.memory_space<vmem>>, vector<1x1x1x128xf32>
    %55 = vector.shape_cast %54 : vector<1x1x1x128xf32> to vector<1x128xf32>
    %56 = vector.shape_cast %53 : vector<1x128xf32> to vector<1x1x1x128xf32>
    tpu.vector_store %arg9[%c0_42, %c0_43, %c5_44, %c0_45], %56 {strides = array<i32>} : memref<1x1x16x128xf32, #tpu.memory_space<vmem>>, vector<1x1x1x128xf32>,
    %cst_46 = arith.constant dense<0.000000e+00> : vector<128xf32>
    %57 = vector.multi_reduction <add>, %39, %cst_46 [0] : vector<2x128xf32> to vector<128xf32>
    %58 = vector.shape_cast %57 : vector<128xf32> to vector<1x128xf32>
    %c0_47 = arith.constant 0 : index
    %c0_48 = arith.constant 0 : index
    %c10 = arith.constant 10 : index
    %c0_49 = arith.constant 0 : index
    %59 = vector.load %arg9[%c0_47, %c0_48, %c10, %c0_49] : memref<1x1x16x128xf32, #tpu.memory_space<vmem>>, vector<1x1x1x128xf32>
    %60 = vector.shape_cast %59 : vector<1x1x1x128xf32> to vector<1x128xf32>
    %61 = arith.addf %60, %58 : vector<1x128xf32>
    %c0_50 = arith.constant 0 : index
    %c0_51 = arith.constant 0 : index
    %c10_52 = arith.constant 10 : index
    %c0_53 = arith.constant 0 : index
    %62 = vector.load %arg9[%c0_50, %c0_51, %c10_52, %c0_53] : memref<1x1x16x128xf32, #tpu.memory_space<vmem>>, vector<1x1x1x128xf32>
    %63 = vector.shape_cast %62 : vector<1x1x1x128xf32> to vector<1x128xf32>
    %64 = vector.shape_cast %61 : vector<1x128xf32> to vector<1x1x1x128xf32>
    tpu.vector_store %arg9[%c0_50, %c0_51, %c10_52, %c0_53], %64 {strides = array<i32>} : memref<1x1x16x128xf32, #tpu.memory_space<vmem>>, vector<1x1x1x128xf32>,
    %65 = math.absf %6 : vector<2x128xf32>
    %cst_54 = arith.constant 0.000000e+00 : f32
    %66 = vector.broadcast %cst_54 : f32 to vector<2x128xf32>
    %67 = arith.subf %66, %65 : vector<2x128xf32>
    %68 = math.exp %67 : vector<2x128xf32>
    %cst_55 = arith.constant 1.000000e+00 : f32
    %69 = vector.broadcast %cst_55 : f32 to vector<2x128xf32>
    %70 = arith.addf %69, %68 : vector<2x128xf32>
    %71 = tpu.reciprocal %70 {approx = true} : vector<2x128xf32> -> vector<2x128xf32>
    %cst_56 = arith.constant 0.000000e+00 : f32
    %72 = vector.broadcast %cst_56 : f32 to vector<2x128xf32>
    %73 = arith.cmpf oge, %6, %72 : vector<2x128xf32>
    %74 = arith.mulf %68, %71 : vector<2x128xf32>
    %75 = arith.select %73, %71, %74 : vector<2x128xi1>, vector<2x128xf32>
    %cst_57 = arith.constant 0.000000e+00 : f32
    %76 = vector.broadcast %cst_57 : f32 to vector<2x128xf32>
    %77 = arith.maximumf %6, %76 : vector<2x128xf32>
    %78 = arith.mulf %6, %14 : vector<2x128xf32>
    %79 = arith.subf %77, %78 : vector<2x128xf32>
    %80 = math.log1p %68 : vector<2x128xf32>
    %81 = arith.addf %79, %80 : vector<2x128xf32>
    %82 = arith.mulf %75, %14 : vector<2x128xf32>
    %cst_58 = arith.constant dense<0.000000e+00> : vector<128xf32>
    %83 = vector.multi_reduction <add>, %82, %cst_58 [0] : vector<2x128xf32> to vector<128xf32>
    %84 = vector.shape_cast %83 : vector<128xf32> to vector<1x128xf32>
    %c0_59 = arith.constant 0 : index
    %c0_60 = arith.constant 0 : index
    %c1 = arith.constant 1 : index
    %c0_61 = arith.constant 0 : index
    %85 = vector.load %arg9[%c0_59, %c0_60, %c1, %c0_61] : memref<1x1x16x128xf32, #tpu.memory_space<vmem>>, vector<1x1x1x128xf32>
    %86 = vector.shape_cast %85 : vector<1x1x1x128xf32> to vector<1x128xf32>
    %87 = arith.addf %86, %84 : vector<1x128xf32>
    %c0_62 = arith.constant 0 : index
    %c0_63 = arith.constant 0 : index
    %c1_64 = arith.constant 1 : index
    %c0_65 = arith.constant 0 : index
    %88 = vector.load %arg9[%c0_62, %c0_63, %c1_64, %c0_65] : memref<1x1x16x128xf32, #tpu.memory_space<vmem>>, vector<1x1x1x128xf32>
    %89 = vector.shape_cast %88 : vector<1x1x1x128xf32> to vector<1x128xf32>
    %90 = vector.shape_cast %87 : vector<1x128xf32> to vector<1x1x1x128xf32>
    tpu.vector_store %arg9[%c0_62, %c0_63, %c1_64, %c0_65], %90 {strides = array<i32>} : memref<1x1x16x128xf32, #tpu.memory_space<vmem>>, vector<1x1x1x128xf32>,
    %cst_66 = arith.constant dense<0.000000e+00> : vector<128xf32>
    %91 = vector.multi_reduction <add>, %75, %cst_66 [0] : vector<2x128xf32> to vector<128xf32>
    %92 = vector.shape_cast %91 : vector<128xf32> to vector<1x128xf32>
    %c0_67 = arith.constant 0 : index
    %c0_68 = arith.constant 0 : index
    %c6 = arith.constant 6 : index
    %c0_69 = arith.constant 0 : index
    %93 = vector.load %arg9[%c0_67, %c0_68, %c6, %c0_69] : memref<1x1x16x128xf32, #tpu.memory_space<vmem>>, vector<1x1x1x128xf32>
    %94 = vector.shape_cast %93 : vector<1x1x1x128xf32> to vector<1x128xf32>
    %95 = arith.addf %94, %92 : vector<1x128xf32>
    %c0_70 = arith.constant 0 : index
    %c0_71 = arith.constant 0 : index
    %c6_72 = arith.constant 6 : index
    %c0_73 = arith.constant 0 : index
    %96 = vector.load %arg9[%c0_70, %c0_71, %c6_72, %c0_73] : memref<1x1x16x128xf32, #tpu.memory_space<vmem>>, vector<1x1x1x128xf32>
    %97 = vector.shape_cast %96 : vector<1x1x1x128xf32> to vector<1x128xf32>
    %98 = vector.shape_cast %95 : vector<1x128xf32> to vector<1x1x1x128xf32>
    tpu.vector_store %arg9[%c0_70, %c0_71, %c6_72, %c0_73], %98 {strides = array<i32>} : memref<1x1x16x128xf32, #tpu.memory_space<vmem>>, vector<1x1x1x128xf32>,
    %cst_74 = arith.constant dense<0.000000e+00> : vector<128xf32>
    %99 = vector.multi_reduction <add>, %81, %cst_74 [0] : vector<2x128xf32> to vector<128xf32>
    %100 = vector.shape_cast %99 : vector<128xf32> to vector<1x128xf32>
    %c0_75 = arith.constant 0 : index
    %c0_76 = arith.constant 0 : index
    %c11 = arith.constant 11 : index
    %c0_77 = arith.constant 0 : index
    %101 = vector.load %arg9[%c0_75, %c0_76, %c11, %c0_77] : memref<1x1x16x128xf32, #tpu.memory_space<vmem>>, vector<1x1x1x128xf32>
    %102 = vector.shape_cast %101 : vector<1x1x1x128xf32> to vector<1x128xf32>
    %103 = arith.addf %102, %100 : vector<1x128xf32>
    %c0_78 = arith.constant 0 : index
    %c0_79 = arith.constant 0 : index
    %c11_80 = arith.constant 11 : index
    %c0_81 = arith.constant 0 : index
    %104 = vector.load %arg9[%c0_78, %c0_79, %c11_80, %c0_81] : memref<1x1x16x128xf32, #tpu.memory_space<vmem>>, vector<1x1x1x128xf32>
    %105 = vector.shape_cast %104 : vector<1x1x1x128xf32> to vector<1x128xf32>
    %106 = vector.shape_cast %103 : vector<1x128xf32> to vector<1x1x1x128xf32>
    tpu.vector_store %arg9[%c0_78, %c0_79, %c11_80, %c0_81], %106 {strides = array<i32>} : memref<1x1x16x128xf32, #tpu.memory_space<vmem>>, vector<1x1x1x128xf32>,
    %107 = math.absf %8 : vector<2x128xf32>
    %cst_82 = arith.constant 0.000000e+00 : f32
    %108 = vector.broadcast %cst_82 : f32 to vector<2x128xf32>
    %109 = arith.subf %108, %107 : vector<2x128xf32>
    %110 = math.exp %109 : vector<2x128xf32>
    %cst_83 = arith.constant 1.000000e+00 : f32
    %111 = vector.broadcast %cst_83 : f32 to vector<2x128xf32>
    %112 = arith.addf %111, %110 : vector<2x128xf32>
    %113 = tpu.reciprocal %112 {approx = true} : vector<2x128xf32> -> vector<2x128xf32>
    %cst_84 = arith.constant 0.000000e+00 : f32
    %114 = vector.broadcast %cst_84 : f32 to vector<2x128xf32>
    %115 = arith.cmpf oge, %8, %114 : vector<2x128xf32>
    %116 = arith.mulf %110, %113 : vector<2x128xf32>
    %117 = arith.select %115, %113, %116 : vector<2x128xi1>, vector<2x128xf32>
    %cst_85 = arith.constant 0.000000e+00 : f32
    %118 = vector.broadcast %cst_85 : f32 to vector<2x128xf32>
    %119 = arith.maximumf %8, %118 : vector<2x128xf32>
    %120 = arith.mulf %8, %14 : vector<2x128xf32>
    %121 = arith.subf %119, %120 : vector<2x128xf32>
    %122 = math.log1p %110 : vector<2x128xf32>
    %123 = arith.addf %121, %122 : vector<2x128xf32>
    %124 = arith.mulf %117, %14 : vector<2x128xf32>
    %cst_86 = arith.constant dense<0.000000e+00> : vector<128xf32>
    %125 = vector.multi_reduction <add>, %124, %cst_86 [0] : vector<2x128xf32> to vector<128xf32>
    %126 = vector.shape_cast %125 : vector<128xf32> to vector<1x128xf32>
    %c0_87 = arith.constant 0 : index
    %c0_88 = arith.constant 0 : index
    %c2 = arith.constant 2 : index
    %c0_89 = arith.constant 0 : index
    %127 = vector.load %arg9[%c0_87, %c0_88, %c2, %c0_89] : memref<1x1x16x128xf32, #tpu.memory_space<vmem>>, vector<1x1x1x128xf32>
    %128 = vector.shape_cast %127 : vector<1x1x1x128xf32> to vector<1x128xf32>
    %129 = arith.addf %128, %126 : vector<1x128xf32>
    %c0_90 = arith.constant 0 : index
    %c0_91 = arith.constant 0 : index
    %c2_92 = arith.constant 2 : index
    %c0_93 = arith.constant 0 : index
    %130 = vector.load %arg9[%c0_90, %c0_91, %c2_92, %c0_93] : memref<1x1x16x128xf32, #tpu.memory_space<vmem>>, vector<1x1x1x128xf32>
    %131 = vector.shape_cast %130 : vector<1x1x1x128xf32> to vector<1x128xf32>
    %132 = vector.shape_cast %129 : vector<1x128xf32> to vector<1x1x1x128xf32>
    tpu.vector_store %arg9[%c0_90, %c0_91, %c2_92, %c0_93], %132 {strides = array<i32>} : memref<1x1x16x128xf32, #tpu.memory_space<vmem>>, vector<1x1x1x128xf32>,
    %cst_94 = arith.constant dense<0.000000e+00> : vector<128xf32>
    %133 = vector.multi_reduction <add>, %117, %cst_94 [0] : vector<2x128xf32> to vector<128xf32>
    %134 = vector.shape_cast %133 : vector<128xf32> to vector<1x128xf32>
    %c0_95 = arith.constant 0 : index
    %c0_96 = arith.constant 0 : index
    %c7 = arith.constant 7 : index
    %c0_97 = arith.constant 0 : index
    %135 = vector.load %arg9[%c0_95, %c0_96, %c7, %c0_97] : memref<1x1x16x128xf32, #tpu.memory_space<vmem>>, vector<1x1x1x128xf32>
    %136 = vector.shape_cast %135 : vector<1x1x1x128xf32> to vector<1x128xf32>
    %137 = arith.addf %136, %134 : vector<1x128xf32>
    %c0_98 = arith.constant 0 : index
    %c0_99 = arith.constant 0 : index
    %c7_100 = arith.constant 7 : index
    %c0_101 = arith.constant 0 : index
    %138 = vector.load %arg9[%c0_98, %c0_99, %c7_100, %c0_101] : memref<1x1x16x128xf32, #tpu.memory_space<vmem>>, vector<1x1x1x128xf32>
    %139 = vector.shape_cast %138 : vector<1x1x1x128xf32> to vector<1x128xf32>
    %140 = vector.shape_cast %137 : vector<1x128xf32> to vector<1x1x1x128xf32>
    tpu.vector_store %arg9[%c0_98, %c0_99, %c7_100, %c0_101], %140 {strides = array<i32>} : memref<1x1x16x128xf32, #tpu.memory_space<vmem>>, vector<1x1x1x128xf32>,
    %cst_102 = arith.constant dense<0.000000e+00> : vector<128xf32>
    %141 = vector.multi_reduction <add>, %123, %cst_102 [0] : vector<2x128xf32> to vector<128xf32>
    %142 = vector.shape_cast %141 : vector<128xf32> to vector<1x128xf32>
    %c0_103 = arith.constant 0 : index
    %c0_104 = arith.constant 0 : index
    %c12 = arith.constant 12 : index
    %c0_105 = arith.constant 0 : index
    %143 = vector.load %arg9[%c0_103, %c0_104, %c12, %c0_105] : memref<1x1x16x128xf32, #tpu.memory_space<vmem>>, vector<1x1x1x128xf32>
    %144 = vector.shape_cast %143 : vector<1x1x1x128xf32> to vector<1x128xf32>
    %145 = arith.addf %144, %142 : vector<1x128xf32>
    %c0_106 = arith.constant 0 : index
    %c0_107 = arith.constant 0 : index
    %c12_108 = arith.constant 12 : index
    %c0_109 = arith.constant 0 : index
    %146 = vector.load %arg9[%c0_106, %c0_107, %c12_108, %c0_109] : memref<1x1x16x128xf32, #tpu.memory_space<vmem>>, vector<1x1x1x128xf32>
    %147 = vector.shape_cast %146 : vector<1x1x1x128xf32> to vector<1x128xf32>
    %148 = vector.shape_cast %145 : vector<1x128xf32> to vector<1x1x1x128xf32>
    tpu.vector_store %arg9[%c0_106, %c0_107, %c12_108, %c0_109], %148 {strides = array<i32>} : memref<1x1x16x128xf32, #tpu.memory_space<vmem>>, vector<1x1x1x128xf32>,
    %149 = math.absf %10 : vector<2x128xf32>
    %cst_110 = arith.constant 0.000000e+00 : f32
    %150 = vector.broadcast %cst_110 : f32 to vector<2x128xf32>
    %151 = arith.subf %150, %149 : vector<2x128xf32>
    %152 = math.exp %151 : vector<2x128xf32>
    %cst_111 = arith.constant 1.000000e+00 : f32
    %153 = vector.broadcast %cst_111 : f32 to vector<2x128xf32>
    %154 = arith.addf %153, %152 : vector<2x128xf32>
    %155 = tpu.reciprocal %154 {approx = true} : vector<2x128xf32> -> vector<2x128xf32>
    %cst_112 = arith.constant 0.000000e+00 : f32
    %156 = vector.broadcast %cst_112 : f32 to vector<2x128xf32>
    %157 = arith.cmpf oge, %10, %156 : vector<2x128xf32>
    %158 = arith.mulf %152, %155 : vector<2x128xf32>
    %159 = arith.select %157, %155, %158 : vector<2x128xi1>, vector<2x128xf32>
    %cst_113 = arith.constant 0.000000e+00 : f32
    %160 = vector.broadcast %cst_113 : f32 to vector<2x128xf32>
    %161 = arith.maximumf %10, %160 : vector<2x128xf32>
    %162 = arith.mulf %10, %14 : vector<2x128xf32>
    %163 = arith.subf %161, %162 : vector<2x128xf32>
    %164 = math.log1p %152 : vector<2x128xf32>
    %165 = arith.addf %163, %164 : vector<2x128xf32>
    %166 = arith.mulf %159, %14 : vector<2x128xf32>
    %cst_114 = arith.constant dense<0.000000e+00> : vector<128xf32>
    %167 = vector.multi_reduction <add>, %166, %cst_114 [0] : vector<2x128xf32> to vector<128xf32>
    %168 = vector.shape_cast %167 : vector<128xf32> to vector<1x128xf32>
    %c0_115 = arith.constant 0 : index
    %c0_116 = arith.constant 0 : index
    %c3 = arith.constant 3 : index
    %c0_117 = arith.constant 0 : index
    %169 = vector.load %arg9[%c0_115, %c0_116, %c3, %c0_117] : memref<1x1x16x128xf32, #tpu.memory_space<vmem>>, vector<1x1x1x128xf32>
    %170 = vector.shape_cast %169 : vector<1x1x1x128xf32> to vector<1x128xf32>
    %171 = arith.addf %170, %168 : vector<1x128xf32>
    %c0_118 = arith.constant 0 : index
    %c0_119 = arith.constant 0 : index
    %c3_120 = arith.constant 3 : index
    %c0_121 = arith.constant 0 : index
    %172 = vector.load %arg9[%c0_118, %c0_119, %c3_120, %c0_121] : memref<1x1x16x128xf32, #tpu.memory_space<vmem>>, vector<1x1x1x128xf32>
    %173 = vector.shape_cast %172 : vector<1x1x1x128xf32> to vector<1x128xf32>
    %174 = vector.shape_cast %171 : vector<1x128xf32> to vector<1x1x1x128xf32>
    tpu.vector_store %arg9[%c0_118, %c0_119, %c3_120, %c0_121], %174 {strides = array<i32>} : memref<1x1x16x128xf32, #tpu.memory_space<vmem>>, vector<1x1x1x128xf32>,
    %cst_122 = arith.constant dense<0.000000e+00> : vector<128xf32>
    %175 = vector.multi_reduction <add>, %159, %cst_122 [0] : vector<2x128xf32> to vector<128xf32>
    %176 = vector.shape_cast %175 : vector<128xf32> to vector<1x128xf32>
    %c0_123 = arith.constant 0 : index
    %c0_124 = arith.constant 0 : index
    %c8 = arith.constant 8 : index
    %c0_125 = arith.constant 0 : index
    %177 = vector.load %arg9[%c0_123, %c0_124, %c8, %c0_125] : memref<1x1x16x128xf32, #tpu.memory_space<vmem>>, vector<1x1x1x128xf32>
    %178 = vector.shape_cast %177 : vector<1x1x1x128xf32> to vector<1x128xf32>
    %179 = arith.addf %178, %176 : vector<1x128xf32>
    %c0_126 = arith.constant 0 : index
    %c0_127 = arith.constant 0 : index
    %c8_128 = arith.constant 8 : index
    %c0_129 = arith.constant 0 : index
    %180 = vector.load %arg9[%c0_126, %c0_127, %c8_128, %c0_129] : memref<1x1x16x128xf32, #tpu.memory_space<vmem>>, vector<1x1x1x128xf32>
    %181 = vector.shape_cast %180 : vector<1x1x1x128xf32> to vector<1x128xf32>
    %182 = vector.shape_cast %179 : vector<1x128xf32> to vector<1x1x1x128xf32>
    tpu.vector_store %arg9[%c0_126, %c0_127, %c8_128, %c0_129], %182 {strides = array<i32>} : memref<1x1x16x128xf32, #tpu.memory_space<vmem>>, vector<1x1x1x128xf32>,
    %cst_130 = arith.constant dense<0.000000e+00> : vector<128xf32>
    %183 = vector.multi_reduction <add>, %165, %cst_130 [0] : vector<2x128xf32> to vector<128xf32>
    %184 = vector.shape_cast %183 : vector<128xf32> to vector<1x128xf32>
    %c0_131 = arith.constant 0 : index
    %c0_132 = arith.constant 0 : index
    %c13 = arith.constant 13 : index
    %c0_133 = arith.constant 0 : index
    %185 = vector.load %arg9[%c0_131, %c0_132, %c13, %c0_133] : memref<1x1x16x128xf32, #tpu.memory_space<vmem>>, vector<1x1x1x128xf32>
    %186 = vector.shape_cast %185 : vector<1x1x1x128xf32> to vector<1x128xf32>
    %187 = arith.addf %186, %184 : vector<1x128xf32>
    %c0_134 = arith.constant 0 : index
    %c0_135 = arith.constant 0 : index
    %c13_136 = arith.constant 13 : index
    %c0_137 = arith.constant 0 : index
    %188 = vector.load %arg9[%c0_134, %c0_135, %c13_136, %c0_137] : memref<1x1x16x128xf32, #tpu.memory_space<vmem>>, vector<1x1x1x128xf32>
    %189 = vector.shape_cast %188 : vector<1x1x1x128xf32> to vector<1x128xf32>
    %190 = vector.shape_cast %187 : vector<1x128xf32> to vector<1x1x1x128xf32>
    tpu.vector_store %arg9[%c0_134, %c0_135, %c13_136, %c0_137], %190 {strides = array<i32>} : memref<1x1x16x128xf32, #tpu.memory_space<vmem>>, vector<1x1x1x128xf32>,
    %191 = math.absf %12 : vector<2x128xf32>
    %cst_138 = arith.constant 0.000000e+00 : f32
    %192 = vector.broadcast %cst_138 : f32 to vector<2x128xf32>
    %193 = arith.subf %192, %191 : vector<2x128xf32>
    %194 = math.exp %193 : vector<2x128xf32>
    %cst_139 = arith.constant 1.000000e+00 : f32
    %195 = vector.broadcast %cst_139 : f32 to vector<2x128xf32>
    %196 = arith.addf %195, %194 : vector<2x128xf32>
    %197 = tpu.reciprocal %196 {approx = true} : vector<2x128xf32> -> vector<2x128xf32>
    %cst_140 = arith.constant 0.000000e+00 : f32
    %198 = vector.broadcast %cst_140 : f32 to vector<2x128xf32>
    %199 = arith.cmpf oge, %12, %198 : vector<2x128xf32>
    %200 = arith.mulf %194, %197 : vector<2x128xf32>
    %201 = arith.select %199, %197, %200 : vector<2x128xi1>, vector<2x128xf32>
    %cst_141 = arith.constant 0.000000e+00 : f32
    %202 = vector.broadcast %cst_141 : f32 to vector<2x128xf32>
    %203 = arith.maximumf %12, %202 : vector<2x128xf32>
    %204 = arith.mulf %12, %14 : vector<2x128xf32>
    %205 = arith.subf %203, %204 : vector<2x128xf32>
    %206 = math.log1p %194 : vector<2x128xf32>
    %207 = arith.addf %205, %206 : vector<2x128xf32>
    %208 = arith.mulf %201, %14 : vector<2x128xf32>
    %cst_142 = arith.constant dense<0.000000e+00> : vector<128xf32>
    %209 = vector.multi_reduction <add>, %208, %cst_142 [0] : vector<2x128xf32> to vector<128xf32>
    %210 = vector.shape_cast %209 : vector<128xf32> to vector<1x128xf32>
    %c0_143 = arith.constant 0 : index
    %c0_144 = arith.constant 0 : index
    %c4 = arith.constant 4 : index
    %c0_145 = arith.constant 0 : index
    %211 = vector.load %arg9[%c0_143, %c0_144, %c4, %c0_145] : memref<1x1x16x128xf32, #tpu.memory_space<vmem>>, vector<1x1x1x128xf32>
    %212 = vector.shape_cast %211 : vector<1x1x1x128xf32> to vector<1x128xf32>
    %213 = arith.addf %212, %210 : vector<1x128xf32>
    %c0_146 = arith.constant 0 : index
    %c0_147 = arith.constant 0 : index
    %c4_148 = arith.constant 4 : index
    %c0_149 = arith.constant 0 : index
    %214 = vector.load %arg9[%c0_146, %c0_147, %c4_148, %c0_149] : memref<1x1x16x128xf32, #tpu.memory_space<vmem>>, vector<1x1x1x128xf32>
    %215 = vector.shape_cast %214 : vector<1x1x1x128xf32> to vector<1x128xf32>
    %216 = vector.shape_cast %213 : vector<1x128xf32> to vector<1x1x1x128xf32>
    tpu.vector_store %arg9[%c0_146, %c0_147, %c4_148, %c0_149], %216 {strides = array<i32>} : memref<1x1x16x128xf32, #tpu.memory_space<vmem>>, vector<1x1x1x128xf32>,
    %cst_150 = arith.constant dense<0.000000e+00> : vector<128xf32>
    %217 = vector.multi_reduction <add>, %201, %cst_150 [0] : vector<2x128xf32> to vector<128xf32>
    %218 = vector.shape_cast %217 : vector<128xf32> to vector<1x128xf32>
    %c0_151 = arith.constant 0 : index
    %c0_152 = arith.constant 0 : index
    %c9 = arith.constant 9 : index
    %c0_153 = arith.constant 0 : index
    %219 = vector.load %arg9[%c0_151, %c0_152, %c9, %c0_153] : memref<1x1x16x128xf32, #tpu.memory_space<vmem>>, vector<1x1x1x128xf32>
    %220 = vector.shape_cast %219 : vector<1x1x1x128xf32> to vector<1x128xf32>
    %221 = arith.addf %220, %218 : vector<1x128xf32>
    %c0_154 = arith.constant 0 : index
    %c0_155 = arith.constant 0 : index
    %c9_156 = arith.constant 9 : index
    %c0_157 = arith.constant 0 : index
    %222 = vector.load %arg9[%c0_154, %c0_155, %c9_156, %c0_157] : memref<1x1x16x128xf32, #tpu.memory_space<vmem>>, vector<1x1x1x128xf32>
    %223 = vector.shape_cast %222 : vector<1x1x1x128xf32> to vector<1x128xf32>
    %224 = vector.shape_cast %221 : vector<1x128xf32> to vector<1x1x1x128xf32>
    tpu.vector_store %arg9[%c0_154, %c0_155, %c9_156, %c0_157], %224 {strides = array<i32>} : memref<1x1x16x128xf32, #tpu.memory_space<vmem>>, vector<1x1x1x128xf32>,
    %cst_158 = arith.constant dense<0.000000e+00> : vector<128xf32>
    %225 = vector.multi_reduction <add>, %207, %cst_158 [0] : vector<2x128xf32> to vector<128xf32>
    %226 = vector.shape_cast %225 : vector<128xf32> to vector<1x128xf32>
    %c0_159 = arith.constant 0 : index
    %c0_160 = arith.constant 0 : index
    %c14 = arith.constant 14 : index
    %c0_161 = arith.constant 0 : index
    %227 = vector.load %arg9[%c0_159, %c0_160, %c14, %c0_161] : memref<1x1x16x128xf32, #tpu.memory_space<vmem>>, vector<1x1x1x128xf32>
    %228 = vector.shape_cast %227 : vector<1x1x1x128xf32> to vector<1x128xf32>
    %229 = arith.addf %228, %226 : vector<1x128xf32>
    %c0_162 = arith.constant 0 : index
    %c0_163 = arith.constant 0 : index
    %c14_164 = arith.constant 14 : index
    %c0_165 = arith.constant 0 : index
    %230 = vector.load %arg9[%c0_162, %c0_163, %c14_164, %c0_165] : memref<1x1x16x128xf32, #tpu.memory_space<vmem>>, vector<1x1x1x128xf32>
    %231 = vector.shape_cast %230 : vector<1x1x1x128xf32> to vector<1x128xf32>
    %232 = vector.shape_cast %229 : vector<1x128xf32> to vector<1x1x1x128xf32>
    tpu.vector_store %arg9[%c0_162, %c0_163, %c14_164, %c0_165], %232 {strides = array<i32>} : memref<1x1x16x128xf32, #tpu.memory_space<vmem>>, vector<1x1x1x128xf32>,
    return
  }
  func.func @transform_0(%arg0: i32, %arg1: i32, %arg2: i32) -> (i32, i32, i32) {
    %c1_i32 = arith.constant 1 : i32
    %0 = arith.muli %arg1, %c1_i32 : i32
    %1 = arith.addi %0, %arg2 : i32
    %c0_i32 = arith.constant 0 : i32
    %c0_i32_0 = arith.constant 0 : i32
    return %arg0, %1, %c0_i32 : i32, i32, i32
  }
  func.func @transform_1(%arg0: i32, %arg1: i32, %arg2: i32) -> (i32, i32, i32) {
    %c1_i32 = arith.constant 1 : i32
    %0 = arith.muli %arg1, %c1_i32 : i32
    %1 = arith.addi %0, %arg2 : i32
    %c0_i32 = arith.constant 0 : i32
    %c0_i32_0 = arith.constant 0 : i32
    return %arg0, %1, %c0_i32 : i32, i32, i32
  }
  func.func @transform_2(%arg0: i32, %arg1: i32, %arg2: i32) -> (i32, i32, i32) {
    %c1_i32 = arith.constant 1 : i32
    %0 = arith.muli %arg1, %c1_i32 : i32
    %1 = arith.addi %0, %arg2 : i32
    %c0_i32 = arith.constant 0 : i32
    %c0_i32_0 = arith.constant 0 : i32
    return %arg0, %1, %c0_i32 : i32, i32, i32
  }
  func.func @transform_3(%arg0: i32, %arg1: i32, %arg2: i32) -> (i32, i32, i32) {
    %c1_i32 = arith.constant 1 : i32
    %0 = arith.muli %arg1, %c1_i32 : i32
    %1 = arith.addi %0, %arg2 : i32
    %c0_i32 = arith.constant 0 : i32
    %c0_i32_0 = arith.constant 0 : i32
    return %arg0, %1, %c0_i32 : i32, i32, i32
  }
  func.func @transform_4(%arg0: i32, %arg1: i32, %arg2: i32) -> (i32, i32, i32) {
    %c1_i32 = arith.constant 1 : i32
    %0 = arith.muli %arg1, %c1_i32 : i32
    %1 = arith.addi %0, %arg2 : i32
    %c0_i32 = arith.constant 0 : i32
    %c0_i32_0 = arith.constant 0 : i32
    return %arg0, %1, %c0_i32 : i32, i32, i32
  }
  func.func @transform_5(%arg0: i32, %arg1: i32, %arg2: i32) -> (i32, i32, i32) {
    %c1_i32 = arith.constant 1 : i32
    %0 = arith.muli %arg1, %c1_i32 : i32
    %1 = arith.addi %0, %arg2 : i32
    %c0_i32 = arith.constant 0 : i32
    %c0_i32_0 = arith.constant 0 : i32
    return %arg0, %1, %c0_i32 : i32, i32, i32
  }
  func.func @transform_6(%arg0: i32, %arg1: i32, %arg2: i32) -> (i32, i32, i32, i32) {
    %c0_i32 = arith.constant 0 : i32
    %c0_i32_0 = arith.constant 0 : i32
    %c0_i32_1 = arith.constant 0 : i32
    return %arg0, %arg1, %c0_i32, %c0_i32_0 : i32, i32, i32, i32
  }
}

</mosaic_0001>

<llo_original>
// kernel: tpu_custom_call.1
$region0: #{tpu_custom_call.1}
  #allocation0 [shape = 'u32[]', space=smem, size = 0x4, offset = 0x4, fixed_abs, tag = 'smem constant byte address 0x4 - core index']
  #allocation1 [shape = 'u32[144,128]{1,0:T(1,128)}', space=vmem, size = 0x12000, scoped, tag = 'internal scratch']
  %s0 = inlined_call_operand.hbm [shape: f32[2,2,128], index: 0, kind: input, shape index: {}]
  %s1 = inlined_call_operand.hbm [shape: f32[2,2,128], index: 1, kind: input, shape index: {}]
  %s2 = inlined_call_operand.hbm [shape: f32[2,2,128], index: 2, kind: input, shape index: {}]
  %s3 = inlined_call_operand.vmem [shape: f32[2,2,128], index: 3, kind: input, shape index: {}]
  %s4 = inlined_call_operand.hbm [shape: f32[2,2,128], index: 4, kind: input, shape index: {}]
  %s5 = inlined_call_operand.vmem [shape: f32[2,2,128], index: 5, kind: input, shape index: {}]
  %s6 = inlined_call_operand.hbm [shape: f32[2,1,16,128], index: 6, kind: output, shape index: {}]
  %s7 = sld [smem:[#allocation0]]
  $region77: #{tpu_custom_call.1} parent=0
    _
  %s9 = ssub.s32 1, %s7
  %s10 = scalar_select 0, %s9, %s7
  $region1: #{tpu_custom_call.1} parent=0
    #allocation2 [shape = 'u8[2048]{0}', space=vmem, size = 0x800, scoped, tag = 'input window, operand 0']
    #allocation3 [shape = 's32[2]{0}', space=sflag, size = 0x8, scoped, tag = 'scoped memory for tpu_custom_call.1']
    #allocation4 [shape = 's32[2]{0}', space=sflag, size = 0x8, scoped, tag = 'scoped memory for tpu_custom_call.1']
    #allocation5 [shape = 'u8[2048]{0}', space=vmem, size = 0x800, scoped, tag = 'input window, operand 1']
    #allocation6 [shape = 's32[2]{0}', space=sflag, size = 0x8, scoped, tag = 'scoped memory for tpu_custom_call.1']
    #allocation7 [shape = 'u8[2048]{0}', space=vmem, size = 0x800, scoped, tag = 'input window, operand 2']
    #allocation8 [shape = 'u8[2048]{0}', space=vmem, size = 0x800, scoped, tag = 'input window, operand 4']
    #allocation9 [shape = 's32[2]{0}', space=sflag, size = 0x8, scoped, tag = 'scoped memory for tpu_custom_call.1']
    #allocation10 [shape = 'u8[16384]{0}', space=vmem, size = 0x4000, scoped, tag = 'output window, operand 0']
    %11 = vsyncpa [#allocation3], 0
    %s12 = scalar_lea.sflag [#allocation3], 1
    %13 = vsyncpa %s12, 0
    %14 = vsyncpa [#allocation6], 0
    %s15 = scalar_lea.sflag [#allocation6], 1
    %16 = vsyncpa %s15, 0
    %17 = vsyncpa [#allocation9], 0
    %s18 = scalar_lea.sflag [#allocation9], 1
    %19 = vsyncpa %s18, 0
    %20 = vsyncpa [#allocation4], 0
    %s21 = scalar_lea.sflag [#allocation4], 1
    %22 = vsyncpa %s21, 0
    loop: start=0, step=1, limit=4
    $region2: #{tpu_custom_call.1} parent=1 // loop_pre_header
      _
    $region3: #{tpu_custom_call.1} parent=1 // loop_header
      %s24 = sphi 0, %s28
      %p25 = scmp.ge.s32.totalorder %s24, 4
      %s31 = sphi 0, %s50
      %s32 = sphi 0, %s46
      %s33 = sphi 0, %s42
      %s34 = sphi 0, %s31
      %s35 = sphi 0, %s32
      %s36 = sphi 0, %s33
      %s37 = sphi 0, %s34
      %s38 = sphi 0, %s35
      %s39 = sphi 0, %s36
      %s57 = sphi 0, %s59
      %s60 = sphi 0, %s57
      %s61 = sphi 0, %s60
      %s77 = sphi 0, %s61
      %s87 = sphi 0, %s89
      %s90 = sphi 0, %s87
      %s91 = sphi 0, %s90
      %s107 = sphi 0, %s91
      %s117 = sphi 0, %s119
      %s120 = sphi 0, %s117
      %s121 = sphi 0, %s120
      %s137 = sphi 0, %s121
      %s147 = sphi 0, %s149
      %s150 = sphi 0, %s147
      %s151 = sphi 0, %s150
      %s167 = sphi 0, %s151
      %s177 = sphi 0, %s179
      %s180 = sphi 0, %s177
      %s181 = sphi 0, %s180
      %s197 = sphi 0, %s181
      %s207 = sphi 0, %s209
      %s210 = sphi 0, %s207
      %s211 = sphi 0, %s210
      %s227 = sphi 0, %s211
      %s235 = sphi 0, %s237
      %s238 = sphi 0, %s235
      %s239 = sphi 0, %s238
      %s255 = sphi 0, %s239
    $region4: #{tpu_custom_call.1} parent=1 // loop_header_branch
      %27 = sbr.rel (%p25) target = $region8
    $region5: #{tpu_custom_call.1} parent=1 // loop_body
      %s29 = ssub.s32 %s24, 1
      %s30 = ssub.s32 %s24, 2
      %s40 = sadd.s32 1, %s33
      %p41 = scmp.ge.s32.totalorder %s40, 1
      %s42 = scalar_select %p41, 0, %s40
      %s43 = sadd.s32 1, %s32
      %s44 = scalar_select %p41, %s43, %s32
      %p45 = scmp.ge.s32.totalorder %s44, 1
      %s46 = scalar_select %p45, 0, %s44
      %s47 = sadd.s32 1, %s31
      %s48 = scalar_select %p45, %s47, %s31
      %p49 = scmp.ge.s32.totalorder %s48, 2
      %s50 = scalar_select %p49, 0, %s48
      %s51 = sadd.s32 %s32, %s33
      %s52 = sadd.s32 %s46, %s42
      %s53 = ssub.s32 %s31, %s50
      %s54 = ssub.s32 %s51, %s52
      %s55 = sor.u32 %s53, %s54
      %p56 = scmp.eq.s32.totalorder %s55, 0
      %s58 = sadd.s32 %s57, 1
      %s59 = scalar_select %p56, %s57, %s58
      %p62 = pneg %p56
      %p63 = scmp.eq.s32.totalorder %s24, 1
      %p64 = por %p62, %p63
      %p65 = scmp.ne.s32.totalorder %s57, %s60
      %p66 = scmp.eq.s32.totalorder %s24, 0
      %p67 = por %p65, %p66
      %p68 = scmp.ne.s32.totalorder %s57, %s60
      %p69 = scmp.eq.s32.totalorder %s29, 1
      %p70 = por %p68, %p69
      %p71 = scmp.ne.s32.totalorder %s60, %s61
      %p72 = scmp.eq.s32.totalorder %s29, 0
      %p73 = por %p71, %p72
      %p74 = scmp.ne.s32.totalorder %s60, %s61
      %p75 = scmp.eq.s32.totalorder %s30, 1
      %p76 = por %p74, %p75
      %p78 = scmp.ne.s32.totalorder %s61, %s77
      %p79 = scmp.eq.s32.totalorder %s30, 0
      %p80 = por %p78, %p79
      %s81 = sadd.s32 %s32, %s33
      %s82 = sadd.s32 %s46, %s42
      %s83 = ssub.s32 %s31, %s50
      %s84 = ssub.s32 %s81, %s82
      %s85 = sor.u32 %s83, %s84
      %p86 = scmp.eq.s32.totalorder %s85, 0
      %s88 = sadd.s32 %s87, 1
      %s89 = scalar_select %p86, %s87, %s88
      %p92 = pneg %p86
      %p93 = scmp.eq.s32.totalorder %s24, 1
      %p94 = por %p92, %p93
      %p95 = scmp.ne.s32.totalorder %s87, %s90
      %p96 = scmp.eq.s32.totalorder %s24, 0
      %p97 = por %p95, %p96
      %p98 = scmp.ne.s32.totalorder %s87, %s90
      %p99 = scmp.eq.s32.totalorder %s29, 1
      %p100 = por %p98, %p99
      %p101 = scmp.ne.s32.totalorder %s90, %s91
      %p102 = scmp.eq.s32.totalorder %s29, 0
      %p103 = por %p101, %p102
      %p104 = scmp.ne.s32.totalorder %s90, %s91
      %p105 = scmp.eq.s32.totalorder %s30, 1
      %p106 = por %p104, %p105
      %p108 = scmp.ne.s32.totalorder %s91, %s107
      %p109 = scmp.eq.s32.totalorder %s30, 0
      %p110 = por %p108, %p109
      %s111 = sadd.s32 %s32, %s33
      %s112 = sadd.s32 %s46, %s42
      %s113 = ssub.s32 %s31, %s50
      %s114 = ssub.s32 %s111, %s112
      %s115 = sor.u32 %s113, %s114
      %p116 = scmp.eq.s32.totalorder %s115, 0
      %s118 = sadd.s32 %s117, 1
      %s119 = scalar_select %p116, %s117, %s118
      %p122 = pneg %p116
      %p123 = scmp.eq.s32.totalorder %s24, 1
      %p124 = por %p122, %p123
      %p125 = scmp.ne.s32.totalorder %s117, %s120
      %p126 = scmp.eq.s32.totalorder %s24, 0
      %p127 = por %p125, %p126
      %p128 = scmp.ne.s32.totalorder %s117, %s120
      %p129 = scmp.eq.s32.totalorder %s29, 1
      %p130 = por %p128, %p129
      %p131 = scmp.ne.s32.totalorder %s120, %s121
      %p132 = scmp.eq.s32.totalorder %s29, 0
      %p133 = por %p131, %p132
      %p134 = scmp.ne.s32.totalorder %s120, %s121
      %p135 = scmp.eq.s32.totalorder %s30, 1
      %p136 = por %p134, %p135
      %p138 = scmp.ne.s32.totalorder %s121, %s137
      %p139 = scmp.eq.s32.totalorder %s30, 0
      %p140 = por %p138, %p139
      %s141 = sadd.s32 %s32, %s33
      %s142 = sadd.s32 %s46, %s42
      %s143 = ssub.s32 %s31, %s50
      %s144 = ssub.s32 %s141, %s142
      %s145 = sor.u32 %s143, %s144
      %p146 = scmp.eq.s32.totalorder %s145, 0
      %s148 = sadd.s32 %s147, 1
      %s149 = scalar_select %p146, %s147, %s148
      %p152 = pneg %p146
      %p153 = scmp.eq.s32.totalorder %s24, 1
      %p154 = por %p152, %p153
      %p155 = scmp.ne.s32.totalorder %s147, %s150
      %p156 = scmp.eq.s32.totalorder %s24, 0
      %p157 = por %p155, %p156
      %p158 = scmp.ne.s32.totalorder %s147, %s150
      %p159 = scmp.eq.s32.totalorder %s29, 1
      %p160 = por %p158, %p159
      %p161 = scmp.ne.s32.totalorder %s150, %s151
      %p162 = scmp.eq.s32.totalorder %s29, 0
      %p163 = por %p161, %p162
      %p164 = scmp.ne.s32.totalorder %s150, %s151
      %p165 = scmp.eq.s32.totalorder %s30, 1
      %p166 = por %p164, %p165
      %p168 = scmp.ne.s32.totalorder %s151, %s167
      %p169 = scmp.eq.s32.totalorder %s30, 0
      %p170 = por %p168, %p169
      %s171 = sadd.s32 %s32, %s33
      %s172 = sadd.s32 %s46, %s42
      %s173 = ssub.s32 %s31, %s50
      %s174 = ssub.s32 %s171, %s172
      %s175 = sor.u32 %s173, %s174
      %p176 = scmp.eq.s32.totalorder %s175, 0
      %s178 = sadd.s32 %s177, 1
      %s179 = scalar_select %p176, %s177, %s178
      %p182 = pneg %p176
      %p183 = scmp.eq.s32.totalorder %s24, 1
      %p184 = por %p182, %p183
      %p185 = scmp.ne.s32.totalorder %s177, %s180
      %p186 = scmp.eq.s32.totalorder %s24, 0
      %p187 = por %p185, %p186
      %p188 = scmp.ne.s32.totalorder %s177, %s180
      %p189 = scmp.eq.s32.totalorder %s29, 1
      %p190 = por %p188, %p189
      %p191 = scmp.ne.s32.totalorder %s180, %s181
      %p192 = scmp.eq.s32.totalorder %s29, 0
      %p193 = por %p191, %p192
      %p194 = scmp.ne.s32.totalorder %s180, %s181
      %p195 = scmp.eq.s32.totalorder %s30, 1
      %p196 = por %p194, %p195
      %p198 = scmp.ne.s32.totalorder %s181, %s197
      %p199 = scmp.eq.s32.totalorder %s30, 0
      %p200 = por %p198, %p199
      %s201 = sadd.s32 %s32, %s33
      %s202 = sadd.s32 %s46, %s42
      %s203 = ssub.s32 %s31, %s50
      %s204 = ssub.s32 %s201, %s202
      %s205 = sor.u32 %s203, %s204
      %p206 = scmp.eq.s32.totalorder %s205, 0
      %s208 = sadd.s32 %s207, 1
      %s209 = scalar_select %p206, %s207, %s208
      %p212 = pneg %p206
      %p213 = scmp.eq.s32.totalorder %s24, 1
      %p214 = por %p212, %p213
      %p215 = scmp.ne.s32.totalorder %s207, %s210
      %p216 = scmp.eq.s32.totalorder %s24, 0
      %p217 = por %p215, %p216
      %p218 = scmp.ne.s32.totalorder %s207, %s210
      %p219 = scmp.eq.s32.totalorder %s29, 1
      %p220 = por %p218, %p219
      %p221 = scmp.ne.s32.totalorder %s210, %s211
      %p222 = scmp.eq.s32.totalorder %s29, 0
      %p223 = por %p221, %p222
      %p224 = scmp.ne.s32.totalorder %s210, %s211
      %p225 = scmp.eq.s32.totalorder %s30, 1
      %p226 = por %p224, %p225
      %p228 = scmp.ne.s32.totalorder %s211, %s227
      %p229 = scmp.eq.s32.totalorder %s30, 0
      %p230 = por %p228, %p229
      %s231 = ssub.s32 %s31, %s50
      %s232 = ssub.s32 %s32, %s46
      %s233 = sor.u32 %s231, %s232
      %p234 = scmp.eq.s32.totalorder %s233, 0
      %s236 = sadd.s32 %s235, 1
      %s237 = scalar_select %p234, %s235, %s236
      %p240 = pneg %p234
      %p241 = scmp.eq.s32.totalorder %s24, 1
      %p242 = por %p240, %p241
      %p243 = scmp.ne.s32.totalorder %s235, %s238
      %p244 = scmp.eq.s32.totalorder %s24, 0
      %p245 = por %p243, %p244
      %p246 = scmp.ne.s32.totalorder %s235, %s238
      %p247 = scmp.eq.s32.totalorder %s29, 1
      %p248 = por %p246, %p247
      %p249 = scmp.ne.s32.totalorder %s238, %s239
      %p250 = scmp.eq.s32.totalorder %s29, 0
      %p251 = por %p249, %p250
      %p252 = scmp.ne.s32.totalorder %s238, %s239
      %p253 = scmp.eq.s32.totalorder %s30, 1
      %p254 = por %p252, %p253
      %p256 = scmp.ne.s32.totalorder %s239, %s255
      %p257 = scmp.eq.s32.totalorder %s30, 0
      %p258 = por %p256, %p257
      %p259 = scmp.le.s32.totalorder 1, %s24
      %p260 = scmp.lt.s32.totalorder %s24, 3
      %p261 = pnand %p259, %p260
      %p262 = pneg %p261
      // Predicated region
      $region9: #{tpu_custom_call.1} parent=5 // pred_check
        _
      $region10: #{tpu_custom_call.1} parent=5 // pred_check_branch
        %264 = sbr.rel (%p261) target = $region12
      $region11: #{tpu_custom_call.1} parent=5 // pred_region
        %s265 = ssub.s32 %s24, 1
      $region12: #{tpu_custom_call.1} parent=5 // pred_fallthru
        _
      %p266 = scmp.lt.s32.totalorder %s24, 2
      // Predicated region
      $region13: #{tpu_custom_call.1} parent=5 // pred_check
        %p267 = pneg %p266
      $region14: #{tpu_custom_call.1} parent=5 // pred_check_branch
        %269 = sbr.rel (%p267) target = $region16
      $region15: #{tpu_custom_call.1} parent=5 // pred_region
        // Predicated region
        $region17: #{tpu_custom_call.1} parent=15 // pred_check
          %p270 = pneg %p67
        $region18: #{tpu_custom_call.1} parent=15 // pred_check_branch
          %272 = sbr.rel (%p270) target = $region20
        $region19: #{tpu_custom_call.1} parent=15 // pred_region
          %s273 = sand.u32 %s57, 1
          %s274 = scalar_lea.sflag [#allocation3], %s273
          %s275 = sand.u32 %s57, 1
          %s276 = smul.addr %s275, 2
          %s277 = scalar_lea.vmem [#allocation2], %s276
          %s278 = sadd.s32 %s32, %s33
          %s280 = ssub.s32 32, 32
          %281 = vsyncadd %s274, %s280
          %s282 = sadd.s32 %s278, %s31
          %s283 = smul.addr %s282, 32
          %s284 = scalar_lea.hbm %s0, %s283
          %s286 = sshll.u32 %s277, 4
          %s287 = int_to_ptr.vmem [resolvable:$true] %s286
          %289 = dma.hbm_to_vmem [thread:$0]  %s284, 32, %s287, %s274
        $region20: #{tpu_custom_call.1} parent=15 // pred_fallthru
          _
        // Predicated region
        $region21: #{tpu_custom_call.1} parent=15 // pred_check
          %p290 = pneg %p97
        $region22: #{tpu_custom_call.1} parent=15 // pred_check_branch
          %292 = sbr.rel (%p290) target = $region24
        $region23: #{tpu_custom_call.1} parent=15 // pred_region
          %s293 = sand.u32 %s24, 1
          %s294 = scalar_lea.sflag [#allocation6], %s293
          %s295 = sand.u32 %s87, 1
          %s296 = smul.addr %s295, 2
          %s297 = scalar_lea.vmem [#allocation5], %s296
          %s298 = sadd.s32 %s32, %s33
          %s300 = ssub.s32 32, 32
          %301 = vsyncadd %s294, %s300
          %s302 = sadd.s32 %s298, %s31
          %s303 = smul.addr %s302, 32
          %s304 = scalar_lea.hbm %s1, %s303
          %s306 = sshll.u32 %s297, 4
          %s307 = int_to_ptr.vmem [resolvable:$true] %s306
          %309 = dma.hbm_to_vmem [thread:$0]  %s304, 32, %s307, %s294
        $region24: #{tpu_custom_call.1} parent=15 // pred_fallthru
          _
        // Predicated region
        $region25: #{tpu_custom_call.1} parent=15 // pred_check
          %p310 = pneg %p127
        $region26: #{tpu_custom_call.1} parent=15 // pred_check_branch
          %312 = sbr.rel (%p310) target = $region28
        $region27: #{tpu_custom_call.1} parent=15 // pred_region
          %s313 = sand.u32 %s24, 1
          %s314 = scalar_lea.sflag [#allocation6], %s313
          %s315 = sand.u32 %s117, 1
          %s316 = smul.addr %s315, 2
          %s317 = scalar_lea.vmem [#allocation7], %s316
          %s318 = sadd.s32 %s32, %s33
          %s320 = ssub.s32 32, 32
          %321 = vsyncadd %s314, %s320
          %s322 = sadd.s32 %s318, %s31
          %s323 = smul.addr %s322, 32
          %s324 = scalar_lea.hbm %s2, %s323
          %s326 = sshll.u32 %s317, 4
          %s327 = int_to_ptr.vmem [resolvable:$true] %s326
          %329 = dma.hbm_to_vmem [thread:$0]  %s324, 32, %s327, %s314
        $region28: #{tpu_custom_call.1} parent=15 // pred_fallthru
          _
        // Predicated region
        $region29: #{tpu_custom_call.1} parent=15 // pred_check
          %p330 = pneg %p157
        $region30: #{tpu_custom_call.1} parent=15 // pred_check_branch
          %332 = sbr.rel (%p330) target = $region32
        $region31: #{tpu_custom_call.1} parent=15 // pred_region
          %s333 = sadd.s32 %s32, %s33
          %p334 = scmp.lt.s32.totalorder %s31, 1
          %s335 = scalar_select %p334, %s31, 1
          %p336 = scmp.lt.s32.totalorder %s333, 0
          %s337 = scalar_select %p336, %s333, 0
          %s338 = sadd.s32 %s337, %s335
          %s339 = smul.addr %s338, 2
          %s340 = scalar_lea.vmem %s3, %s339
          %s341 = sadd.s32 %s32, %s33
        $region32: #{tpu_custom_call.1} parent=15 // pred_fallthru
          _
        // Predicated region
        $region33: #{tpu_custom_call.1} parent=15 // pred_check
          %p342 = pneg %p187
        $region34: #{tpu_custom_call.1} parent=15 // pred_check_branch
          %344 = sbr.rel (%p342) target = $region36
        $region35: #{tpu_custom_call.1} parent=15 // pred_region
          %s345 = sand.u32 %s177, 1
          %s346 = scalar_lea.sflag [#allocation9], %s345
          %s347 = sand.u32 %s177, 1
          %s348 = smul.addr %s347, 2
          %s349 = scalar_lea.vmem [#allocation8], %s348
          %s350 = sadd.s32 %s32, %s33
          %s352 = ssub.s32 32, 32
          %353 = vsyncadd %s346, %s352
          %s354 = sadd.s32 %s350, %s31
          %s355 = smul.addr %s354, 32
          %s356 = scalar_lea.hbm %s4, %s355
          %s358 = sshll.u32 %s349, 4
          %s359 = int_to_ptr.vmem [resolvable:$true] %s358
          %361 = dma.hbm_to_vmem [thread:$0]  %s356, 32, %s359, %s346
        $region36: #{tpu_custom_call.1} parent=15 // pred_fallthru
          _
        // Predicated region
        $region37: #{tpu_custom_call.1} parent=15 // pred_check
          %p362 = pneg %p217
        $region38: #{tpu_custom_call.1} parent=15 // pred_check_branch
          %364 = sbr.rel (%p362) target = $region40
        $region39: #{tpu_custom_call.1} parent=15 // pred_region
          %s365 = sadd.s32 %s32, %s33
          %p366 = scmp.lt.s32.totalorder %s31, 1
          %s367 = scalar_select %p366, %s31, 1
          %p368 = scmp.lt.s32.totalorder %s365, 0
          %s369 = scalar_select %p368, %s365, 0
          %s370 = sadd.s32 %s369, %s367
          %s371 = smul.addr %s370, 2
          %s372 = scalar_lea.vmem %s5, %s371
          %s373 = sadd.s32 %s32, %s33
        $region40: #{tpu_custom_call.1} parent=15 // pred_fallthru
          _
      $region16: #{tpu_custom_call.1} parent=5 // pred_fallthru
        _
      %p374 = scmp.le.s32.totalorder 1, %s24
      %p375 = scmp.lt.s32.totalorder %s24, 3
      %p376 = pnand %p374, %p375
      %p377 = pneg %p376
      // Predicated region
      $region41: #{tpu_custom_call.1} parent=5 // pred_check
        _
      $region42: #{tpu_custom_call.1} parent=5 // pred_check_branch
        %379 = sbr.rel (%p376) target = $region44
      $region43: #{tpu_custom_call.1} parent=5 // pred_region
        %s380 = ssub.s32 %s24, 1
        %s381 = sand.u32 %s60, 1
        %s382 = scalar_lea.sflag [#allocation3], %s381
        %s383 = sand.u32 %s60, 1
        %s384 = smul.addr %s383, 2
        %s385 = scalar_lea.vmem [#allocation2], %s384
        // Predicated region
        $region45: #{tpu_custom_call.1} parent=43 // pred_check
          %p386 = pneg %p73
        $region46: #{tpu_custom_call.1} parent=43 // pred_check_branch
          %388 = sbr.rel (%p386) target = $region48
        $region47: #{tpu_custom_call.1} parent=43 // pred_region
          %389 = dma.done %s382, 32
        $region48: #{tpu_custom_call.1} parent=43 // pred_fallthru
          _
        %s390 = sand.u32 %s29, 1
        %s391 = scalar_lea.sflag [#allocation6], %s390
        %s392 = sand.u32 %s90, 1
        %s393 = smul.addr %s392, 2
        %s394 = scalar_lea.vmem [#allocation5], %s393
        // Predicated region
        $region49: #{tpu_custom_call.1} parent=43 // pred_check
          %p395 = pneg %p103
        $region50: #{tpu_custom_call.1} parent=43 // pred_check_branch
          %397 = sbr.rel (%p395) target = $region52
        $region51: #{tpu_custom_call.1} parent=43 // pred_region
          %398 = dma.done %s391, 32
        $region52: #{tpu_custom_call.1} parent=43 // pred_fallthru
          _
        %s399 = sand.u32 %s29, 1
        %s400 = scalar_lea.sflag [#allocation6], %s399
        %s401 = sand.u32 %s120, 1
        %s402 = smul.addr %s401, 2
        %s403 = scalar_lea.vmem [#allocation7], %s402
        // Predicated region
        $region53: #{tpu_custom_call.1} parent=43 // pred_check
          %p404 = pneg %p133
        $region54: #{tpu_custom_call.1} parent=43 // pred_check_branch
          %406 = sbr.rel (%p404) target = $region56
        $region55: #{tpu_custom_call.1} parent=43 // pred_region
          %407 = dma.done %s400, 32
        $region56: #{tpu_custom_call.1} parent=43 // pred_fallthru
          _
        %s408 = sand.u32 %s180, 1
        %s409 = scalar_lea.sflag [#allocation9], %s408
        %s410 = sand.u32 %s180, 1
        %s411 = smul.addr %s410, 2
        %s412 = scalar_lea.vmem [#allocation8], %s411
        // Predicated region
        $region57: #{tpu_custom_call.1} parent=43 // pred_check
          %p413 = pneg %p193
        $region58: #{tpu_custom_call.1} parent=43 // pred_check_branch
          %415 = sbr.rel (%p413) target = $region60
        $region59: #{tpu_custom_call.1} parent=43 // pred_region
          %416 = dma.done %s409, 32
        $region60: #{tpu_custom_call.1} parent=43 // pred_fallthru
          _
        %s417 = sand.u32 %s60, 1
        %s418 = scalar_lea.sflag [#allocation3], %s417
        %s419 = sand.u32 %s60, 1
        %s420 = smul.addr %s419, 2
        %s421 = scalar_lea.vmem [#allocation2], %s420
        %p422 = pneg %p73
        %p423 = pneg %p70
        %s424 = sand.u32 %s29, 1
        %s425 = scalar_lea.sflag [#allocation6], %s424
        %s426 = sand.u32 %s90, 1
        %s427 = smul.addr %s426, 2
        %s428 = scalar_lea.vmem [#allocation5], %s427
        %p429 = pneg %p103
        %p430 = pneg %p100
        %s431 = sand.u32 %s29, 1
        %s432 = scalar_lea.sflag [#allocation6], %s431
        %s433 = sand.u32 %s120, 1
        %s434 = smul.addr %s433, 2
        %s435 = scalar_lea.vmem [#allocation7], %s434
        %p436 = pneg %p133
        %p437 = pneg %p130
        %s438 = sadd.s32 %s35, %s36
        %p439 = scmp.lt.s32.totalorder %s34, 1
        %s440 = scalar_select %p439, %s34, 1
        %p441 = scmp.lt.s32.totalorder %s438, 0
        %s442 = scalar_select %p441, %s438, 0
        %s443 = sadd.s32 %s442, %s440
        %s444 = smul.addr %s443, 2
        %s445 = scalar_lea.vmem %s3, %s444
        %p446 = pneg %p163
        %p447 = pneg %p160
        %s448 = sand.u32 %s180, 1
        %s449 = scalar_lea.sflag [#allocation9], %s448
        %s450 = sand.u32 %s180, 1
        %s451 = smul.addr %s450, 2
        %s452 = scalar_lea.vmem [#allocation8], %s451
        %p453 = pneg %p193
        %p454 = pneg %p190
        %s455 = sadd.s32 %s35, %s36
        %p456 = scmp.lt.s32.totalorder %s34, 1
        %s457 = scalar_select %p456, %s34, 1
        %p458 = scmp.lt.s32.totalorder %s455, 0
        %s459 = scalar_select %p458, %s455, 0
        %s460 = sadd.s32 %s459, %s457
        %s461 = smul.addr %s460, 2
        %s462 = scalar_lea.vmem %s5, %s461
        %p463 = pneg %p223
        %p464 = pneg %p220
        %p465 = pneg %p251
        %p466 = pneg %p248
        %s467 = sand.u32 %s238, 1
        %s468 = scalar_lea.sflag [#allocation4], %s467
        %s469 = sand.u32 %s238, 1
        %s470 = smul.addr %s469, 16
        %s471 = scalar_lea.vmem [#allocation10], %s470
        %s472 = sadd.s32 %s35, %s36
        %s473 = sadd.s32 %s35, %s36
        %s474 = sadd.s32 %s35, %s36
        %s475 = sadd.s32 %s35, %s36
        %p476 = scmp.lt.s32.totalorder %s34, 1
        %s477 = scalar_select %p476, %s34, 1
        %p478 = scmp.lt.s32.totalorder %s475, 0
        %s479 = scalar_select %p478, %s475, 0
        %s480 = sadd.s32 %s479, %s477
        %s481 = smul.addr %s480, 2
        %s482 = scalar_lea.vmem %s3, %s481
        %s483 = sadd.s32 %s35, %s36
        %s484 = sadd.s32 %s35, %s36
        %s485 = sadd.s32 %s35, %s36
        %p486 = scmp.lt.s32.totalorder %s34, 1
        %s487 = scalar_select %p486, %s34, 1
        %p488 = scmp.lt.s32.totalorder %s485, 0
        %s489 = scalar_select %p488, %s485, 0
        %s490 = sadd.s32 %s489, %s487
        %s491 = smul.addr %s490, 2
        %s492 = scalar_lea.vmem %s5, %s491
        %s493 = sadd.s32 %s35, %s36
        %p494 = scmp.eq.s32.totalorder %s36, 0
        // Predicated region
        $region61: #{tpu_custom_call.1} parent=43 // pred_check
          %p495 = pneg %p494
        $region62: #{tpu_custom_call.1} parent=43 // pred_check_branch
          %497 = sbr.rel (%p495) target = $region64
        $region63: #{tpu_custom_call.1} parent=43 // pred_region
          %498 = vst [vmem:[%s471] sm:$0xff] 0.0
          %499 = vst [vmem:[%s471 + $0x8] sm:$0xff] 0.0
        $region64: #{tpu_custom_call.1} parent=43 // pred_fallthru
          _
        %v500 = vld [vmem:[%s385] sm:$0x3]
        %v501 = vld [vmem:[%s394] sm:$0x3]
        %v502 = vld [vmem:[%s403] sm:$0x3]
        %v503 = vld [vmem:[%s482] sm:$0x3]
        %v504 = vld [vmem:[%s412] sm:$0x3]
        %v505 = vld [vmem:[%s492] sm:$0x3]
        %vm506 = vcmask 1041408
        %v507 = vsel %vm506, %v505, 0.0
        %v508 = vrot.slane %v507, 4
        %v509 = vadd.f32 %v507, %v508
        %v510 = vrot.slane %v509, 2
        %v511 = vadd.f32 %v509, %v510
        %v512 = vrot.slane %v511, 1
        %v513 = vadd.f32 %v511, %v512
        %v514 = vld [vmem:[%s471 + $0xf] sm:$0x1]
        %v515 = vadd.f32 %v514, %v513
        %516 = vst [vmem:[%s471 + $0xf] sm:$0x1] %v515
        %v517 = vand.u32 2147483647, %v500
        %v518 = vsub.f32 0.0, %v517
        %v519 = vmul.f32 %v518, 1.442695
        %v520 = vpow.pop %v519
        %v521 = vadd.f32 %v520, 1.0
        %v522 = vrcp.pop %v521
        %vm523 = vcmp.ge.f32.partialorder %v500, 0.0
        %v524 = vmul.f32 %v520, %v522
        %v525 = vsel %vm523, %v522, %v524
        %v526 = vmax.f32 %v500, 0.0
        %v527 = vmul.f32 %v500, %v505
        %v528 = vsub.f32 %v526, %v527
        %v529 = vadd.f32 %v520, 1.0
        %v530 = vlog2.pop %v529
        %v531 = vmul.f32 %v530, 0.6931472
        %v532 = vmul.f32 -0.5, %v520
        %v533 = vadd.f32 %v532, 1.0
        %v534 = vmul.f32 %v533, %v520
        %v535 = vand.u32 2147483647, %v520
        %vm536 = vcmp.lt.f32.partialorder %v535, 0.0004427343
        %v537 = vsel %vm536, %v534, %v531
        %v538 = vadd.f32 %v528, %v537
        %v539 = vmul.f32 %v525, %v505
        %v540 = vsel %vm506, %v539, 0.0
        %v541 = vrot.slane %v540, 4
        %v542 = vadd.f32 %v540, %v541
        %v543 = vrot.slane %v542, 2
        %v544 = vadd.f32 %v542, %v543
        %v545 = vrot.slane %v544, 1
        %v546 = vadd.f32 %v544, %v545
        %v547 = vld [vmem:[%s471] sm:$0x1]
        %v548 = vadd.f32 %v547, %v546
        %549 = vst [vmem:[%s471] sm:$0x1] %v548
        %v550 = vsel %vm506, %v525, 0.0
        %v551 = vrot.slane %v550, 4
        %v552 = vadd.f32 %v550, %v551
        %v553 = vrot.slane %v552, 2
        %v554 = vadd.f32 %v552, %v553
        %v555 = vrot.slane %v554, 1
        %v556 = vadd.f32 %v554, %v555
        %v557 = vld [vmem:[%s471 + $0x5] sm:$0x1]
        %v558 = vadd.f32 %v557, %v556
        %559 = vst [vmem:[%s471 + $0x5] sm:$0x1] %v558
        %v560 = vsel %vm506, %v538, 0.0
        %v561 = vrot.slane %v560, 4
        %v562 = vadd.f32 %v560, %v561
        %v563 = vrot.slane %v562, 2
        %v564 = vadd.f32 %v562, %v563
        %v565 = vrot.slane %v564, 1
        %v566 = vadd.f32 %v564, %v565
        %v567 = vld [vmem:[%s471 + $0xa] sm:$0x1]
        %v568 = vadd.f32 %v567, %v566
        %569 = vst [vmem:[%s471 + $0xa] sm:$0x1] %v568
        %v570 = vand.u32 2147483647, %v501
        %v571 = vsub.f32 0.0, %v570
        %v572 = vmul.f32 %v571, 1.442695
        %v573 = vpow.pop %v572
        %v574 = vadd.f32 %v573, 1.0
        %v575 = vrcp.pop %v574
        %vm576 = vcmp.ge.f32.partialorder %v501, 0.0
        %v577 = vmul.f32 %v573, %v575
        %v578 = vsel %vm576, %v575, %v577
        %v579 = vmax.f32 %v501, 0.0
        %v580 = vmul.f32 %v501, %v505
        %v581 = vsub.f32 %v579, %v580
        %v582 = vadd.f32 %v573, 1.0
        %v583 = vlog2.pop %v582
        %v584 = vmul.f32 %v583, 0.6931472
        %v585 = vmul.f32 -0.5, %v573
        %v586 = vadd.f32 %v585, 1.0
        %v587 = vmul.f32 %v586, %v573
        %v588 = vand.u32 2147483647, %v573
        %vm589 = vcmp.lt.f32.partialorder %v588, 0.0004427343
        %v590 = vsel %vm589, %v587, %v584
        %v591 = vadd.f32 %v581, %v590
        %v592 = vmul.f32 %v578, %v505
        %v593 = vsel %vm506, %v592, 0.0
        %v594 = vrot.slane %v593, 4
        %v595 = vadd.f32 %v593, %v594
        %v596 = vrot.slane %v595, 2
        %v597 = vadd.f32 %v595, %v596
        %v598 = vrot.slane %v597, 1
        %v599 = vadd.f32 %v597, %v598
        %v600 = vld [vmem:[%s471 + $0x1] sm:$0x1]
        %v601 = vadd.f32 %v600, %v599
        %602 = vst [vmem:[%s471 + $0x1] sm:$0x1] %v601
        %v603 = vsel %vm506, %v578, 0.0
        %v604 = vrot.slane %v603, 4
        %v605 = vadd.f32 %v603, %v604
        %v606 = vrot.slane %v605, 2
        %v607 = vadd.f32 %v605, %v606
        %v608 = vrot.slane %v607, 1
        %v609 = vadd.f32 %v607, %v608
        %v610 = vld [vmem:[%s471 + $0x6] sm:$0x1]
        %v611 = vadd.f32 %v610, %v609
        %612 = vst [vmem:[%s471 + $0x6] sm:$0x1] %v611
        %v613 = vsel %vm506, %v591, 0.0
        %v614 = vrot.slane %v613, 4
        %v615 = vadd.f32 %v613, %v614
        %v616 = vrot.slane %v615, 2
        %v617 = vadd.f32 %v615, %v616
        %v618 = vrot.slane %v617, 1
        %v619 = vadd.f32 %v617, %v618
        %v620 = vld [vmem:[%s471 + $0xb] sm:$0x1]
        %v621 = vadd.f32 %v620, %v619
        %622 = vst [vmem:[%s471 + $0xb] sm:$0x1] %v621
        %v623 = vand.u32 2147483647, %v502
        %v624 = vsub.f32 0.0, %v623
        %v625 = vmul.f32 %v624, 1.442695
        %v626 = vpow.pop %v625
        %v627 = vadd.f32 %v626, 1.0
        %v628 = vrcp.pop %v627
        %vm629 = vcmp.ge.f32.partialorder %v502, 0.0
        %v630 = vmul.f32 %v626, %v628
        %v631 = vsel %vm629, %v628, %v630
        %v632 = vmax.f32 %v502, 0.0
        %v633 = vmul.f32 %v502, %v505
        %v634 = vsub.f32 %v632, %v633
        %v635 = vadd.f32 %v626, 1.0
        %v636 = vlog2.pop %v635
        %v637 = vmul.f32 %v636, 0.6931472
        %v638 = vmul.f32 -0.5, %v626
        %v639 = vadd.f32 %v638, 1.0
        %v640 = vmul.f32 %v639, %v626
        %v641 = vand.u32 2147483647, %v626
        %vm642 = vcmp.lt.f32.partialorder %v641, 0.0004427343
        %v643 = vsel %vm642, %v640, %v637
        %v644 = vadd.f32 %v634, %v643
        %v645 = vmul.f32 %v631, %v505
        %v646 = vsel %vm506, %v645, 0.0
        %v647 = vrot.slane %v646, 4
        %v648 = vadd.f32 %v646, %v647
        %v649 = vrot.slane %v648, 2
        %v650 = vadd.f32 %v648, %v649
        %v651 = vrot.slane %v650, 1
        %v652 = vadd.f32 %v650, %v651
        %v653 = vld [vmem:[%s471 + $0x2] sm:$0x1]
        %v654 = vadd.f32 %v653, %v652
        %655 = vst [vmem:[%s471 + $0x2] sm:$0x1] %v654
        %v656 = vsel %vm506, %v631, 0.0
        %v657 = vrot.slane %v656, 4
        %v658 = vadd.f32 %v656, %v657
        %v659 = vrot.slane %v658, 2
        %v660 = vadd.f32 %v658, %v659
        %v661 = vrot.slane %v660, 1
        %v662 = vadd.f32 %v660, %v661
        %v663 = vld [vmem:[%s471 + $0x7] sm:$0x1]
        %v664 = vadd.f32 %v663, %v662
        %665 = vst [vmem:[%s471 + $0x7] sm:$0x1] %v664
        %v666 = vsel %vm506, %v644, 0.0
        %v667 = vrot.slane %v666, 4
        %v668 = vadd.f32 %v666, %v667
        %v669 = vrot.slane %v668, 2
        %v670 = vadd.f32 %v668, %v669
        %v671 = vrot.slane %v670, 1
        %v672 = vadd.f32 %v670, %v671
        %v673 = vld [vmem:[%s471 + $0xc] sm:$0x1]
        %v674 = vadd.f32 %v673, %v672
        %675 = vst [vmem:[%s471 + $0xc] sm:$0x1] %v674
        %v676 = vand.u32 2147483647, %v503
        %v677 = vsub.f32 0.0, %v676
        %v678 = vmul.f32 %v677, 1.442695
        %v679 = vpow.pop %v678
        %v680 = vadd.f32 %v679, 1.0
        %v681 = vrcp.pop %v680
        %vm682 = vcmp.ge.f32.partialorder %v503, 0.0
        %v683 = vmul.f32 %v679, %v681
        %v684 = vsel %vm682, %v681, %v683
        %v685 = vmax.f32 %v503, 0.0
        %v686 = vmul.f32 %v503, %v505
        %v687 = vsub.f32 %v685, %v686
        %v688 = vadd.f32 %v679, 1.0
        %v689 = vlog2.pop %v688
        %v690 = vmul.f32 %v689, 0.6931472
        %v691 = vmul.f32 -0.5, %v679
        %v692 = vadd.f32 %v691, 1.0
        %v693 = vmul.f32 %v692, %v679
        %v694 = vand.u32 2147483647, %v679
        %vm695 = vcmp.lt.f32.partialorder %v694, 0.0004427343
        %v696 = vsel %vm695, %v693, %v690
        %v697 = vadd.f32 %v687, %v696
        %v698 = vmul.f32 %v684, %v505
        %v699 = vsel %vm506, %v698, 0.0
        %v700 = vrot.slane %v699, 4
        %v701 = vadd.f32 %v699, %v700
        %v702 = vrot.slane %v701, 2
        %v703 = vadd.f32 %v701, %v702
        %v704 = vrot.slane %v703, 1
        %v705 = vadd.f32 %v703, %v704
        %v706 = vld [vmem:[%s471 + $0x3] sm:$0x1]
        %v707 = vadd.f32 %v706, %v705
        %708 = vst [vmem:[%s471 + $0x3] sm:$0x1] %v707
        %v709 = vsel %vm506, %v684, 0.0
        %v710 = vrot.slane %v709, 4
        %v711 = vadd.f32 %v709, %v710
        %v712 = vrot.slane %v711, 2
        %v713 = vadd.f32 %v711, %v712
        %v714 = vrot.slane %v713, 1
        %v715 = vadd.f32 %v713, %v714
        %v716 = vld [vmem:[%s471 + $0x8] sm:$0x1]
        %v717 = vadd.f32 %v716, %v715
        %718 = vst [vmem:[%s471 + $0x8] sm:$0x1] %v717
        %v719 = vsel %vm506, %v697, 0.0
        %v720 = vrot.slane %v719, 4
        %v721 = vadd.f32 %v719, %v720
        %v722 = vrot.slane %v721, 2
        %v723 = vadd.f32 %v721, %v722
        %v724 = vrot.slane %v723, 1
        %v725 = vadd.f32 %v723, %v724
        %v726 = vld [vmem:[%s471 + $0xd] sm:$0x1]
        %v727 = vadd.f32 %v726, %v725
        %728 = vst [vmem:[%s471 + $0xd] sm:$0x1] %v727
        %v729 = vand.u32 2147483647, %v504
        %v730 = vsub.f32 0.0, %v729
        %v731 = vmul.f32 %v730, 1.442695
        %v732 = vpow.pop %v731
        %v733 = vadd.f32 %v732, 1.0
        %v734 = vrcp.pop %v733
        %vm735 = vcmp.ge.f32.partialorder %v504, 0.0
        %v736 = vmul.f32 %v732, %v734
        %v737 = vsel %vm735, %v734, %v736
        %v738 = vmax.f32 %v504, 0.0
        %v739 = vmul.f32 %v504, %v505
        %v740 = vsub.f32 %v738, %v739
        %v741 = vadd.f32 %v732, 1.0
        %v742 = vlog2.pop %v741
        %v743 = vmul.f32 %v742, 0.6931472
        %v744 = vmul.f32 -0.5, %v732
        %v745 = vadd.f32 %v744, 1.0
        %v746 = vmul.f32 %v745, %v732
        %v747 = vand.u32 2147483647, %v732
        %vm748 = vcmp.lt.f32.partialorder %v747, 0.0004427343
        %v749 = vsel %vm748, %v746, %v743
        %v750 = vadd.f32 %v740, %v749
        %v751 = vmul.f32 %v737, %v505
        %v752 = vsel %vm506, %v751, 0.0
        %v753 = vrot.slane %v752, 4
        %v754 = vadd.f32 %v752, %v753
        %v755 = vrot.slane %v754, 2
        %v756 = vadd.f32 %v754, %v755
        %v757 = vrot.slane %v756, 1
        %v758 = vadd.f32 %v756, %v757
        %v759 = vld [vmem:[%s471 + $0x4] sm:$0x1]
        %v760 = vadd.f32 %v759, %v758
        %761 = vst [vmem:[%s471 + $0x4] sm:$0x1] %v760
        %v762 = vsel %vm506, %v737, 0.0
        %v763 = vrot.slane %v762, 4
        %v764 = vadd.f32 %v762, %v763
        %v765 = vrot.slane %v764, 2
        %v766 = vadd.f32 %v764, %v765
        %v767 = vrot.slane %v766, 1
        %v768 = vadd.f32 %v766, %v767
        %v769 = vld [vmem:[%s471 + $0x9] sm:$0x1]
        %v770 = vadd.f32 %v769, %v768
        %771 = vst [vmem:[%s471 + $0x9] sm:$0x1] %v770
        %v772 = vsel %vm506, %v750, 0.0
        %v773 = vrot.slane %v772, 4
        %v774 = vadd.f32 %v772, %v773
        %v775 = vrot.slane %v774, 2
        %v776 = vadd.f32 %v774, %v775
        %v777 = vrot.slane %v776, 1
        %v778 = vadd.f32 %v776, %v777
        %v779 = vld [vmem:[%s471 + $0xe] sm:$0x1]
        %v780 = vadd.f32 %v779, %v778
        %781 = vst [vmem:[%s471 + $0xe] sm:$0x1] %v780
        %s782 = sand.u32 %s238, 1
        %s783 = scalar_lea.sflag [#allocation4], %s782
        %s784 = sand.u32 %s238, 1
        %s785 = smul.addr %s784, 16
        %s786 = scalar_lea.vmem [#allocation10], %s785
        // Predicated region
        $region65: #{tpu_custom_call.1} parent=43 // pred_check
          %p787 = pneg %p248
        $region66: #{tpu_custom_call.1} parent=43 // pred_check_branch
          %789 = sbr.rel (%p787) target = $region68
        $region67: #{tpu_custom_call.1} parent=43 // pred_region
          %s791 = ssub.s32 256, 256
          %792 = vsyncadd %s783, %s791
          %s793 = smul.addr %s35, 2
          %s794 = smul.addr %s34, 2
          %s795 = sadd.s32 %s793, %s794
          %s796 = smul.addr %s795, 128
          %s797 = scalar_lea.hbm %s6, %s796
          %s798 = sshll.u32 %s786, 4
          %s799 = int_to_ptr.vmem [resolvable:$true] %s798
          %804 = dma.vmem_to_hbm [thread:$0]  %s799, 256, %s797, %s783, 128, 128, 8
        $region68: #{tpu_custom_call.1} parent=43 // pred_fallthru
          _
      $region44: #{tpu_custom_call.1} parent=5 // pred_fallthru
        _
      %p805 = scmp.le.s32.totalorder 2, %s24
      // Predicated region
      $region69: #{tpu_custom_call.1} parent=5 // pred_check
        %p806 = pneg %p805
      $region70: #{tpu_custom_call.1} parent=5 // pred_check_branch
        %808 = sbr.rel (%p806) target = $region72
      $region71: #{tpu_custom_call.1} parent=5 // pred_region
        %s809 = ssub.s32 %s24, 2
        // Predicated region
        $region73: #{tpu_custom_call.1} parent=71 // pred_check
          %p810 = pneg %p254
        $region74: #{tpu_custom_call.1} parent=71 // pred_check_branch
          %812 = sbr.rel (%p810) target = $region76
        $region75: #{tpu_custom_call.1} parent=71 // pred_region
          %s813 = sand.u32 %s239, 1
          %s814 = scalar_lea.sflag [#allocation4], %s813
          %s815 = sand.u32 %s239, 1
          %s816 = smul.addr %s815, 16
          %s817 = scalar_lea.vmem [#allocation10], %s816
          %818 = dma.done %s814, 256
        $region76: #{tpu_custom_call.1} parent=71 // pred_fallthru
          _
      $region72: #{tpu_custom_call.1} parent=5 // pred_fallthru
        _
    $region6: #{tpu_custom_call.1} parent=1 // loop_footer
      %s28 = sadd.s32 1, %s24
    $region7: #{tpu_custom_call.1} parent=1 // loop_footer_branch
      %23 = sbr.rel target = $region3
    $region8: #{tpu_custom_call.1} parent=1 // loop_exit
      _
    %819 = vsyncpa [#allocation3], 1
    %s820 = scalar_lea.sflag [#allocation3], 1
    %821 = vsyncpa %s820, 1
    %822 = vsyncpa [#allocation6], 1
    %s823 = scalar_lea.sflag [#allocation6], 1
    %824 = vsyncpa %s823, 1
    %825 = vsyncpa [#allocation9], 1
    %s826 = scalar_lea.sflag [#allocation9], 1
    %827 = vsyncpa %s826, 1
    %828 = vsyncpa [#allocation4], 1
    %s829 = scalar_lea.sflag [#allocation4], 1
    %830 = vsyncpa %s829, 1

</llo_original>
